<compile_context>
chip_gen: v5e
topology: v5e:2x2
jax: 0.10.0
libtpu: 0.0.40
codegen_flags: <defaults>
</compile_context>

<pallas_src>
import functools

import jax
import jax.numpy as jnp
import numpy as np
from jax.experimental import pallas as pl
from jax.experimental.pallas import tpu as pltpu

_NEG_MASK = -1e30  # finite mask sentinel (exp() underflows to exactly 0 in f32)


def _rollout_kernel(action_dim, use_mask, act_lane, logp_lane, ent_lane, *refs):
    """One grid step = one GRUCell step + fused policy/value head.

    refs layout:
      feat, w_ih, w_hh, b_ih, b_hh, w_head, b_head, h0, gumbel, [mask],
      policy_out, scalars_out, hidden_out, h_carry(scratch)
    """
    if use_mask:
        (feat_ref, w_ih_ref, w_hh_ref, b_ih_ref, b_hh_ref,
         w_head_ref, b_head_ref, h0_ref, gumbel_ref, mask_ref,
         policy_ref, scalars_ref, h_out_ref, h_carry) = refs
    else:
        (feat_ref, w_ih_ref, w_hh_ref, b_ih_ref, b_hh_ref,
         w_head_ref, b_head_ref, h0_ref, gumbel_ref,
         policy_ref, scalars_ref, h_out_ref, h_carry) = refs
        mask_ref = None

    H = h_carry.shape[1]
    t = pl.program_id(1)

    # initialize the carried hidden state from h0 at the start of each rollout
    @pl.when(t == 0)
    def _():
        h_carry[...] = h0_ref[...]

    h_prev = h_carry[...]          # (Bb, H) f32
    feat = feat_ref[0]             # (Bb, F) bf16

    # ---- shared GRUCell (torch.nn.GRUCell semantics, gate order [r, z, n]) ----
    # bf16 MXU operands, f32 accumulation; element-wise gate math stays f32.
    gi = jnp.dot(feat, w_ih_ref[...],
                 preferred_element_type=jnp.float32) + b_ih_ref[...]
    gh = jnp.dot(h_prev.astype(jnp.bfloat16), w_hh_ref[...],
                 preferred_element_type=jnp.float32) + b_hh_ref[...]

    r = jax.nn.sigmoid(gi[:, 0 * H:1 * H] + gh[:, 0 * H:1 * H])
    z = jax.nn.sigmoid(gi[:, 1 * H:2 * H] + gh[:, 1 * H:2 * H])
    n = jnp.tanh(gi[:, 2 * H:3 * H] + r * gh[:, 2 * H:3 * H])
    h = (1.0 - z) * n + z * h_prev
    h_carry[...] = h
    h_out_ref[0] = h

    # ---- fused ActionNet + ValueNet head (one lane-padded MXU pass) ----
    head = jnp.dot(h.astype(jnp.bfloat16), w_head_ref[...],
                   preferred_element_type=jnp.float32) + b_head_ref[...]

    Bb, AP = head.shape
    lane = jax.lax.broadcasted_iota(jnp.int32, (Bb, AP), 1)
    if use_mask:
        # wrapper guarantees lane A (value column) and pad lanes are masked 0
        valid = mask_ref[0] != 0
    else:
        valid = lane < action_dim      # mask=None fast path: no mask DMA

    # ---- CategoricalMasked ----
    logits = jnp.where(valid, head, _NEG_MASK)
    m = jnp.max(logits, axis=-1, keepdims=True)
    zl = logits - m
    lse = jnp.log(jnp.sum(jnp.exp(zl), axis=-1, keepdims=True))
    norm_logits = zl - lse              # torch Categorical.logits (normalized)
    probs = jnp.exp(norm_logits)        # torch Categorical.probs
    policy_ref[0] = probs

    # masked entropy: -(logits * probs); masked/padded lanes contribute 0
    p_log_p = jnp.where(valid, norm_logits * probs, 0.0)
    entropy = -jnp.sum(p_log_p, axis=-1, keepdims=True)

    # categorical sample via Gumbel-max over the masked logits
    scores = logits + gumbel_ref[0]
    smax = jnp.max(scores, axis=-1, keepdims=True)
    action = jnp.min(jnp.where(scores == smax, lane, AP), axis=-1, keepdims=True)

    # log_prob of the sampled action (gather via one-hot on the lane axis)
    onehot = (lane == action).astype(jnp.float32)
    log_prob = jnp.sum(norm_logits * onehot, axis=-1, keepdims=True)

    # pack the per-row scalars into one lane-dense (Bb, AP) store:
    #   value stays at its NATIVE lane A (no cross-lane reduce);
    #   action/log_prob/entropy go to static lanes != A.
    # (action round-trips through f32 -> exact for action_dim < 2**24)
    scalars = jnp.where(lane == action_dim, head, 0.0)
    scalars = scalars + jnp.where(lane == act_lane, action.astype(jnp.float32), 0.0)
    scalars = scalars + jnp.where(lane == logp_lane, log_prob, 0.0)
    scalars = scalars + jnp.where(lane == ent_lane, entropy, 0.0)
    scalars_ref[0] = scalars


def init_params(key, feature_dim, action_dim, gru_hidden_dim):
    """Mirror torch defaults (uniform +/- 1/sqrt(hidden)); stored transposed,
    MXU weights cast to bfloat16, biases kept float32, heads fused + lane-padded."""
    H = gru_hidden_dim
    A = action_dim
    AP = int(np.ceil((A + 1) / 128.0) * 128)   # lane-padded head width (>= A+1)
    bound = 1.0 / float(np.sqrt(H))

    def uni(k, shape):
        return jax.random.uniform(k, shape, jnp.float32, -bound, bound)

    ks = jax.random.split(key, 8)
    w_ih = uni(ks[0], (feature_dim, 3 * H))    # GRUCell weight_ih^T, gates [r,z,n]
    w_hh = uni(ks[1], (H, 3 * H))              # GRUCell weight_hh^T
    b_ih = uni(ks[2], (1, 3 * H))
    b_hh = uni(ks[3], (1, 3 * H))
    w_pol = uni(ks[4], (H, A))                 # ActionNet linear^T
    b_pol = uni(ks[5], (1, A))
    w_val = uni(ks[6], (H, 1))                 # ValueNet linear^T
    b_val = uni(ks[7], (1, 1))

    w_head = (jnp.zeros((H, AP), jnp.float32)
              .at[:, :A].set(w_pol).at[:, A:A + 1].set(w_val))
    b_head = (jnp.zeros((1, AP), jnp.float32)
              .at[:, :A].set(b_pol).at[:, A:A + 1].set(b_val))

    return {
        "w_ih": w_ih.astype(jnp.bfloat16),
        "w_hh": w_hh.astype(jnp.bfloat16),
        "b_ih": b_ih,
        "b_hh": b_hh,
        "w_head": w_head.astype(jnp.bfloat16),
        "b_head": b_head,
    }


@functools.partial(jax.jit,
                   static_argnames=("gru_hidden_dim", "action_dim", "block_b"))
def gru_policy_rollout(obs_seq, params, gumbel_seq, *, gru_hidden_dim, action_dim,
                       states_gru=None, mask_seq=None, block_b=None):
    """T-step rollout in ONE pallas_call: weights VMEM-resident, hidden carried."""
    T, B = obs_seq.shape[0], obs_seq.shape[1]
    H, A = gru_hidden_dim, action_dim
    AP = params["w_head"].shape[1]
    F = int(np.prod(obs_seq.shape[2:]))

    if block_b is None:
        block_b = B
    assert B % block_b == 0 and (block_b == B or block_b % 8 == 0)
    nb = B // block_b

    # bf16 feature stream (kernel consumes bf16 MXU operands anyway -> lossless)
    feat_seq = obs_seq.reshape(T, B, F).astype(jnp.bfloat16)
    h0 = (jnp.zeros((B, H), jnp.float32) if states_gru is None
          else states_gru.astype(jnp.float32))
    gumbel_pad = jnp.zeros((T, B, AP), jnp.float32).at[..., :A].set(gumbel_seq)

    use_mask = mask_seq is not None

    const2 = lambda b, t: (0, 0)
    step3 = lambda b, t: (t, b, 0)

    operands = [feat_seq,
                params["w_ih"], params["w_hh"], params["b_ih"], params["b_hh"],
                params["w_head"], params["b_head"],
                h0, gumbel_pad]
    in_specs = [
        pl.BlockSpec((1, block_b, F), step3),                 # feat   (per step)
        pl.BlockSpec((F, 3 * H), const2),                     # w_ih   (resident)
        pl.BlockSpec((H, 3 * H), const2),                     # w_hh   (resident)
        pl.BlockSpec((1, 3 * H), const2),                     # b_ih   (resident)
        pl.BlockSpec((1, 3 * H), const2),                     # b_hh   (resident)
        pl.BlockSpec((H, AP), const2),                        # w_head (resident)
        pl.BlockSpec((1, AP), const2),                        # b_head (resident)
        pl.BlockSpec((block_b, H), lambda b, t: (b, 0)),      # h0 (once per shard)
        pl.BlockSpec((1, block_b, AP), step3),                # gumbel (per step)
    ]
    if use_mask:
        # Only lanes [0, A) may be valid; lane A is the value column and MUST
        # stay masked out of the softmax (wrapper enforces this).  Rows with
        # all actions masked degrade to a uniform distribution over pad lanes.
        mask_pad = (jnp.zeros((T, B, AP), jnp.int32)
                    .at[..., :A].set(mask_seq.astype(jnp.int32)))
        operands.append(mask_pad)
        in_specs.append(pl.BlockSpec((1, block_b, AP), step3))

    # static scalar-packing lanes (any lanes != A; AP >= 128 so always exist)
    act_lane, logp_lane, ent_lane = [l for l in range(AP) if l != A][:3]

    out_shapes = (
        jax.ShapeDtypeStruct((T, B, AP), jnp.float32),   # policy probs (padded)
        jax.ShapeDtypeStruct((T, B, AP), jnp.float32),   # packed scalars
        jax.ShapeDtypeStruct((T, B, H), jnp.float32),    # hidden per step
    )
    out_specs = (
        pl.BlockSpec((1, block_b, AP), step3),
        pl.BlockSpec((1, block_b, AP), step3),
        pl.BlockSpec((1, block_b, H), step3),
    )

    kernel = functools.partial(_rollout_kernel, A, use_mask,
                               act_lane, logp_lane, ent_lane)

    policy_pad, scalars, hidden_seq = pl.pallas_call(
        kernel,
        out_shape=out_shapes,
        grid_spec=pltpu.PrefetchScalarGridSpec(
            num_scalar_prefetch=0,
            grid=(nb, T),
            in_specs=in_specs,
            out_specs=out_specs,
            scratch_shapes=[pltpu.VMEM((block_b, H), jnp.float32)],
        ),
        compiler_params=pltpu.CompilerParams(
            dimension_semantics=("parallel", "arbitrary")),
    )(*operands)

    action = jnp.round(scalars[..., act_lane]).astype(jnp.int32)   # (T, B)
    log_prob = scalars[..., logp_lane]                              # (T, B)
    entropy = scalars[..., ent_lane]                                # (T, B)
    value = scalars[..., A:A + 1]                                   # (T, B, 1)
    policy = policy_pad[..., :A]                                    # (T, B, A)
    return action, policy, log_prob, entropy, value, hidden_seq


def gru_policy_forward(obs, params, gumbel, *, gru_hidden_dim, action_dim,
                       states_gru=None, mask=None):
    """Single-step forward with the exact semantics of the PyTorch module."""
    outs = gru_policy_rollout(
        obs[None], params, gumbel[None],
        gru_hidden_dim=gru_hidden_dim, action_dim=action_dim,
        states_gru=states_gru,
        mask_seq=None if mask is None else mask[None])
    return tuple(o[0] for o in outs)


def _reference_rollout(obs_seq, params, H, A, mask_pad_seq, gumbel_pad_seq, h0):
    """Pure-JAX reference (same bf16 matmul operands, f32 accumulation)."""
    T, B = obs_seq.shape[0], obs_seq.shape[1]
    feat_seq = obs_seq.reshape(T, B, -1).astype(jnp.bfloat16)

    def step(h, inp):
        feat, maskp, gp = inp
        gi = jnp.dot(feat, params["w_ih"],
                     preferred_element_type=jnp.float32) + params["b_ih"]
        gh = jnp.dot(h.astype(jnp.bfloat16), params["w_hh"],
                     preferred_element_type=jnp.float32) + params["b_hh"]
        r = jax.nn.sigmoid(gi[:, :H] + gh[:, :H])
        z = jax.nn.sigmoid(gi[:, H:2 * H] + gh[:, H:2 * H])
        n = jnp.tanh(gi[:, 2 * H:] + r * gh[:, 2 * H:])
        h_new = (1.0 - z) * n + z * h
        head = jnp.dot(h_new.astype(jnp.bfloat16), params["w_head"],
                       preferred_element_type=jnp.float32) + params["b_head"]
        valid = maskp != 0
        logits = jnp.where(valid, head, _NEG_MASK)
        norm = logits - jax.scipy.special.logsumexp(logits, axis=-1, keepdims=True)
        probs = jnp.exp(norm)
        ent = -jnp.sum(jnp.where(valid, norm * probs, 0.0), axis=-1)
        act = jnp.argmax(logits + gp, axis=-1).astype(jnp.int32)
        lp = jnp.take_along_axis(norm, act[:, None], axis=-1)[:, 0]
        val = head[:, A:A + 1]
        return h_new, (act, probs[:, :A], lp, ent, val, h_new)

    _, outs = jax.lax.scan(step, h0, (feat_seq, mask_pad_seq, gumbel_pad_seq))
    return outs


if __name__ == "__main__":
    B, C, Hi, Wi = 2, 4, 16, 16
    feature_dim = C * Hi * Wi                  # 1024 (FlattenExtractor output)
    action_dim = 6
    gru_hidden_dim = 128                       # module default
    T = 8                                      # rollout length for the fused path

    root = jax.random.PRNGKey(0)
    k_obs, k_params, k_g1, k_obs_seq, k_g_seq, k_mask = jax.random.split(root, 6)

    params = init_params(k_params, feature_dim, action_dim, gru_hidden_dim)
    AP = params["w_head"].shape[1]
    h0 = jnp.zeros((B, gru_hidden_dim), jnp.float32)

    # ---- single-step forward (module semantics, mask=None fast path) ----
    obs = jax.random.normal(k_obs, (B, C, Hi, Wi), jnp.float32)   # NCHW
    gumbel = jax.random.gumbel(k_g1, (B, action_dim), jnp.float32)

    action, policy, log_prob, entropy, value, hidden = gru_policy_forward(
        obs, params, gumbel,
        gru_hidden_dim=gru_hidden_dim, action_dim=action_dim,
        states_gru=None, mask=None)
    jax.block_until_ready((action, policy, log_prob, entropy, value, hidden))

    mask_pad1 = jnp.zeros((1, B, AP), jnp.int32).at[..., :action_dim].set(1)
    gumbel_pad1 = (jnp.zeros((1, B, AP), jnp.float32)
                   .at[..., :action_dim].set(gumbel[None]))
    ref1 = _reference_rollout(obs[None], params, gru_hidden_dim, action_dim,
                              mask_pad1, gumbel_pad1, h0)
    r_act, r_probs, r_lp, r_ent, r_val, r_h = [np.asarray(x[0]) for x in ref1]

    np.testing.assert_array_equal(np.asarray(action), r_act)
    np.testing.assert_allclose(np.asarray(policy), r_probs, rtol=2e-3, atol=2e-3)
    np.testing.assert_allclose(np.asarray(log_prob), r_lp, rtol=2e-3, atol=2e-3)
    np.testing.assert_allclose(np.asarray(entropy), r_ent, rtol=2e-3, atol=2e-3)
    np.testing.assert_allclose(np.asarray(value), r_val, rtol=2e-3, atol=2e-3)
    np.testing.assert_allclose(np.asarray(hidden), r_h, rtol=2e-3, atol=2e-3)

    # ---- fused T-step rollout (weights VMEM-resident, masked path) ----
    obs_seq = jax.random.normal(k_obs_seq, (T, B, C, Hi, Wi), jnp.float32)
    gumbel_seq = jax.random.gumbel(k_g_seq, (T, B, action_dim), jnp.float32)
    mask_seq = jax.random.uniform(k_mask, (T, B, action_dim)) > 0.3
    mask_seq = mask_seq.at[..., 0].set(True)   # keep >=1 valid action per row

    outs = gru_policy_rollout(
        obs_seq, params, gumbel_seq,
        gru_hidden_dim=gru_hidden_dim, action_dim=action_dim,
        states_gru=None, mask_seq=mask_seq)
    jax.block_until_ready(outs)
    a_seq, p_seq, lp_seq, ent_seq, v_seq, h_seq = outs

    mask_pad = (jnp.zeros((T, B, AP), jnp.int32)
                .at[..., :action_dim].set(mask_seq.astype(jnp.int32)))
    gumbel_pad = (jnp.zeros((T, B, AP), jnp.float32)
                  .at[..., :action_dim].set(gumbel_seq))
    refT = _reference_rollout(obs_seq, params, gru_hidden_dim, action_dim,
                              mask_pad, gumbel_pad, h0)
    refT = [np.asarray(x) for x in refT]

    np.testing.assert_array_equal(np.asarray(a_seq), refT[0])
    np.testing.assert_allclose(np.asarray(p_seq), refT[1], rtol=2e-3, atol=2e-3)
    np.testing.assert_allclose(np.asarray(lp_seq), refT[2], rtol=2e-3, atol=2e-3)
    np.testing.assert_allclose(np.asarray(ent_seq), refT[3], rtol=2e-3, atol=2e-3)
    np.testing.assert_allclose(np.asarray(v_seq), refT[4], rtol=2e-3, atol=2e-3)
    np.testing.assert_allclose(np.asarray(h_seq), refT[5], rtol=2e-3, atol=2e-3)

    print("KERNEL_OK")
</pallas_src>

<mosaic_0001>
module attributes {stable_mosaic.version = 11 : i64} {
  func.func @_rollout_kernel(%arg0: i32, %arg1: i32, %arg2: memref<1x2x1024xbf16, #tpu.memory_space<vmem>>, %arg3: memref<1024x384xbf16, #tpu.memory_space<vmem>>, %arg4: memref<128x384xbf16, #tpu.memory_space<vmem>>, %arg5: memref<1x384xf32, #tpu.memory_space<vmem>>, %arg6: memref<1x384xf32, #tpu.memory_space<vmem>>, %arg7: memref<128x128xbf16, #tpu.memory_space<vmem>>, %arg8: memref<1x128xf32, #tpu.memory_space<vmem>>, %arg9: memref<2x128xf32, #tpu.memory_space<vmem>>, %arg10: memref<1x2x128xf32, #tpu.memory_space<vmem>>, %arg11: memref<1x2x128xf32, #tpu.memory_space<vmem>>, %arg12: memref<1x2x128xf32, #tpu.memory_space<vmem>>, %arg13: memref<1x2x128xf32, #tpu.memory_space<vmem>>, %arg14: memref<2x128xf32, #tpu.memory_space<vmem>>) attributes {dimension_semantics = [#tpu.dimension_semantics<parallel>, #tpu.dimension_semantics<arbitrary>], iteration_bounds = array<i64: 1, 1>, scalar_prefetch = 0 : i64, scratch_operands = 1 : i64, tpu.core_type = #tpu.core_type<tc>, window_params = [{transform_indices = @transform_0, window_bounds = array<i64: 1, 2, 1024>}, {pipeline_mode = #tpu.pipeline_mode<synchronous>, transform_indices = @transform_1, window_bounds = array<i64: 1024, 384>}, {pipeline_mode = #tpu.pipeline_mode<synchronous>, transform_indices = @transform_2, window_bounds = array<i64: 128, 384>}, {pipeline_mode = #tpu.pipeline_mode<synchronous>, transform_indices = @transform_3, window_bounds = array<i64: 1, 384>}, {pipeline_mode = #tpu.pipeline_mode<synchronous>, transform_indices = @transform_4, window_bounds = array<i64: 1, 384>}, {pipeline_mode = #tpu.pipeline_mode<synchronous>, transform_indices = @transform_5, window_bounds = array<i64: 128, 128>}, {pipeline_mode = #tpu.pipeline_mode<synchronous>, transform_indices = @transform_6, window_bounds = array<i64: 1, 128>}, {transform_indices = @transform_7, window_bounds = array<i64: 2, 128>}, {transform_indices = @transform_8, window_bounds = array<i64: 1, 2, 128>}, {transform_indices = @transform_9, window_bounds = array<i64: 1, 2, 128>}, {transform_indices = @transform_10, window_bounds = array<i64: 1, 2, 128>}, {transform_indices = @transform_11, window_bounds = array<i64: 1, 2, 128>}]} {
    %c0_i32 = arith.constant 0 : i32
    %0 = arith.cmpi eq, %arg1, %c0_i32 : i32
    %1 = arith.extui %0 : i1 to i32
    %c0_i32_0 = arith.constant 0 : i32
    %2 = arith.cmpi ne, %1, %c0_i32_0 : i32
    scf.if %2 {
      %c0_51 = arith.constant 0 : index
      %c0_52 = arith.constant 0 : index
      %126 = vector.load %arg9[%c0_51, %c0_52] : memref<2x128xf32, #tpu.memory_space<vmem>>, vector<2x128xf32>
      %c0_53 = arith.constant 0 : index
      %c0_54 = arith.constant 0 : index
      %127 = vector.load %arg14[%c0_53, %c0_54] : memref<2x128xf32, #tpu.memory_space<vmem>>, vector<2x128xf32>
      tpu.vector_store %arg14[%c0_53, %c0_54], %126 {strides = array<i32>} : memref<2x128xf32, #tpu.memory_space<vmem>>, vector<2x128xf32>,
    } else {
    }
    %c0 = arith.constant 0 : index
    %c0_1 = arith.constant 0 : index
    %3 = vector.load %arg14[%c0, %c0_1] : memref<2x128xf32, #tpu.memory_space<vmem>>, vector<2x128xf32>
    %c0_2 = arith.constant 0 : index
    %c0_3 = arith.constant 0 : index
    %c0_4 = arith.constant 0 : index
    %4 = vector.load %arg2[%c0_2, %c0_3, %c0_4] : memref<1x2x1024xbf16, #tpu.memory_space<vmem>>, vector<1x2x1024xbf16>
    %5 = vector.shape_cast %4 : vector<1x2x1024xbf16> to vector<2x1024xbf16>
    %c0_5 = arith.constant 0 : index
    %c0_6 = arith.constant 0 : index
    %6 = vector.load %arg3[%c0_5, %c0_6] : memref<1024x384xbf16, #tpu.memory_space<vmem>>, vector<1024x384xbf16>
    %cst = arith.constant dense<0.000000e+00> : vector<2x384xf32>
    %7 = tpu.matmul %5, %6, %cst {dimension_numbers = #tpu.dot_dimension_numbers<[1], [0], [0], [1], [0, 0, 1, 1], [], []>} : vector<2x1024xbf16>, vector<1024x384xbf16>, vector<2x384xf32> -> vector<2x384xf32>
    %c0_7 = arith.constant 0 : index
    %c0_8 = arith.constant 0 : index
    %8 = vector.load %arg5[%c0_7, %c0_8] : memref<1x384xf32, #tpu.memory_space<vmem>>, vector<1x384xf32>
    %9 = vector.broadcast %8 : vector<1x384xf32> to vector<2x384xf32>
    %10 = arith.addf %7, %9 : vector<2x384xf32>
    %11 = arith.truncf %3 : vector<2x128xf32> to vector<2x128xbf16>
    %c0_9 = arith.constant 0 : index
    %c0_10 = arith.constant 0 : index
    %12 = vector.load %arg4[%c0_9, %c0_10] : memref<128x384xbf16, #tpu.memory_space<vmem>>, vector<128x384xbf16>
    %cst_11 = arith.constant dense<0.000000e+00> : vector<2x384xf32>
    %13 = tpu.matmul %11, %12, %cst_11 {dimension_numbers = #tpu.dot_dimension_numbers<[1], [0], [0], [1], [0, 0, 1, 1], [], []>} : vector<2x128xbf16>, vector<128x384xbf16>, vector<2x384xf32> -> vector<2x384xf32>
    %c0_12 = arith.constant 0 : index
    %c0_13 = arith.constant 0 : index
    %14 = vector.load %arg6[%c0_12, %c0_13] : memref<1x384xf32, #tpu.memory_space<vmem>>, vector<1x384xf32>
    %15 = vector.broadcast %14 : vector<1x384xf32> to vector<2x384xf32>
    %16 = arith.addf %13, %15 : vector<2x384xf32>
    %17 = vector.extract_strided_slice %10 {offsets = [0, 0], sizes = [2, 128], strides = [1, 1]} : vector<2x384xf32> to vector<2x128xf32>
    %18 = vector.extract_strided_slice %16 {offsets = [0, 0], sizes = [2, 128], strides = [1, 1]} : vector<2x384xf32> to vector<2x128xf32>
    %19 = arith.addf %17, %18 : vector<2x128xf32>
    %20 = arith.negf %19 : vector<2x128xf32>
    %21 = math.exp %20 : vector<2x128xf32>
    %cst_14 = arith.constant 1.000000e+00 : f32
    %22 = vector.broadcast %cst_14 : f32 to vector<2x128xf32>
    %23 = arith.addf %22, %21 : vector<2x128xf32>
    %24 = arith.divf %22, %23 : vector<2x128xf32>
    %25 = vector.extract_strided_slice %10 {offsets = [0, 128], sizes = [2, 128], strides = [1, 1]} : vector<2x384xf32> to vector<2x128xf32>
    %26 = vector.extract_strided_slice %16 {offsets = [0, 128], sizes = [2, 128], strides = [1, 1]} : vector<2x384xf32> to vector<2x128xf32>
    %27 = arith.addf %25, %26 : vector<2x128xf32>
    %28 = arith.negf %27 : vector<2x128xf32>
    %29 = math.exp %28 : vector<2x128xf32>
    %cst_15 = arith.constant 1.000000e+00 : f32
    %30 = vector.broadcast %cst_15 : f32 to vector<2x128xf32>
    %31 = arith.addf %30, %29 : vector<2x128xf32>
    %32 = arith.divf %30, %31 : vector<2x128xf32>
    %33 = vector.extract_strided_slice %10 {offsets = [0, 256], sizes = [2, 128], strides = [1, 1]} : vector<2x384xf32> to vector<2x128xf32>
    %34 = vector.extract_strided_slice %16 {offsets = [0, 256], sizes = [2, 128], strides = [1, 1]} : vector<2x384xf32> to vector<2x128xf32>
    %35 = arith.mulf %24, %34 : vector<2x128xf32>
    %36 = arith.addf %33, %35 : vector<2x128xf32>
    %37 = math.tanh %36 : vector<2x128xf32>
    %cst_16 = arith.constant 1.000000e+00 : f32
    %38 = vector.broadcast %cst_16 : f32 to vector<2x128xf32>
    %39 = arith.subf %38, %32 : vector<2x128xf32>
    %40 = arith.mulf %39, %37 : vector<2x128xf32>
    %41 = arith.mulf %32, %3 : vector<2x128xf32>
    %42 = arith.addf %40, %41 : vector<2x128xf32>
    %c0_17 = arith.constant 0 : index
    %c0_18 = arith.constant 0 : index
    %43 = vector.load %arg14[%c0_17, %c0_18] : memref<2x128xf32, #tpu.memory_space<vmem>>, vector<2x128xf32>
    tpu.vector_store %arg14[%c0_17, %c0_18], %42 {strides = array<i32>} : memref<2x128xf32, #tpu.memory_space<vmem>>, vector<2x128xf32>,
    %c0_19 = arith.constant 0 : index
    %c0_20 = arith.constant 0 : index
    %c0_21 = arith.constant 0 : index
    %44 = vector.load %arg13[%c0_19, %c0_20, %c0_21] : memref<1x2x128xf32, #tpu.memory_space<vmem>>, vector<1x2x128xf32>
    %45 = vector.shape_cast %44 : vector<1x2x128xf32> to vector<2x128xf32>
    %46 = vector.shape_cast %42 : vector<2x128xf32> to vector<1x2x128xf32>
    tpu.vector_store %arg13[%c0_19, %c0_20, %c0_21], %46 {strides = array<i32>} : memref<1x2x128xf32, #tpu.memory_space<vmem>>, vector<1x2x128xf32>,
    %47 = arith.truncf %42 : vector<2x128xf32> to vector<2x128xbf16>
    %c0_22 = arith.constant 0 : index
    %c0_23 = arith.constant 0 : index
    %48 = vector.load %arg7[%c0_22, %c0_23] : memref<128x128xbf16, #tpu.memory_space<vmem>>, vector<128x128xbf16>
    %cst_24 = arith.constant dense<0.000000e+00> : vector<2x128xf32>
    %49 = tpu.matmul %47, %48, %cst_24 {dimension_numbers = #tpu.dot_dimension_numbers<[1], [0], [0], [1], [0, 0, 1, 1], [], []>} : vector<2x128xbf16>, vector<128x128xbf16>, vector<2x128xf32> -> vector<2x128xf32>
    %c0_25 = arith.constant 0 : index
    %c0_26 = arith.constant 0 : index
    %50 = vector.load %arg8[%c0_25, %c0_26] : memref<1x128xf32, #tpu.memory_space<vmem>>, vector<1x128xf32>
    %51 = vector.broadcast %50 : vector<1x128xf32> to vector<2x128xf32>
    %52 = arith.addf %49, %51 : vector<2x128xf32>
    %53 = tpu.iota {dimensions = array<i32: 1>} : vector<2x128xi32>
    %c6_i32 = arith.constant 6 : i32
    %54 = vector.broadcast %c6_i32 : i32 to vector<2x128xi32>
    %55 = arith.cmpi slt, %53, %54 : vector<2x128xi32>
    %cst_27 = arith.constant -1.000000e+30 : f32
    %56 = vector.broadcast %cst_27 : f32 to vector<2x128xf32>
    %57 = arith.select %55, %52, %56 : vector<2x128xi1>, vector<2x128xf32>
    %cst_28 = arith.constant dense<0xFF800000> : vector<2xf32>
    %58 = vector.multi_reduction <maximumf>, %57, %cst_28 [1] : vector<2x128xf32> to vector<2xf32>
    %59 = vector.shape_cast %58 : vector<2xf32> to vector<2x1xf32>
    %60 = vector.broadcast %59 : vector<2x1xf32> to vector<2x128xf32>
    %61 = arith.subf %57, %60 : vector<2x128xf32>
    %62 = math.exp %61 : vector<2x128xf32>
    %cst_29 = arith.constant dense<0.000000e+00> : vector<2xf32>
    %63 = vector.multi_reduction <add>, %62, %cst_29 [1] : vector<2x128xf32> to vector<2xf32>
    %64 = vector.shape_cast %63 : vector<2xf32> to vector<2x1xf32>
    %65 = math.log %64 : vector<2x1xf32>
    %66 = vector.broadcast %65 : vector<2x1xf32> to vector<2x128xf32>
    %67 = arith.subf %61, %66 : vector<2x128xf32>
    %68 = math.exp %67 : vector<2x128xf32>
    %c0_30 = arith.constant 0 : index
    %c0_31 = arith.constant 0 : index
    %c0_32 = arith.constant 0 : index
    %69 = vector.load %arg11[%c0_30, %c0_31, %c0_32] : memref<1x2x128xf32, #tpu.memory_space<vmem>>, vector<1x2x128xf32>
    %70 = vector.shape_cast %69 : vector<1x2x128xf32> to vector<2x128xf32>
    %71 = vector.shape_cast %68 : vector<2x128xf32> to vector<1x2x128xf32>
    tpu.vector_store %arg11[%c0_30, %c0_31, %c0_32], %71 {strides = array<i32>} : memref<1x2x128xf32, #tpu.memory_space<vmem>>, vector<1x2x128xf32>,
    %72 = arith.mulf %67, %68 : vector<2x128xf32>
    %cst_33 = arith.constant 0.000000e+00 : f32
    %73 = vector.broadcast %cst_33 : f32 to vector<2x128xf32>
    %74 = arith.select %55, %72, %73 : vector<2x128xi1>, vector<2x128xf32>
    %cst_34 = arith.constant dense<0.000000e+00> : vector<2xf32>
    %75 = vector.multi_reduction <add>, %74, %cst_34 [1] : vector<2x128xf32> to vector<2xf32>
    %76 = vector.shape_cast %75 : vector<2xf32> to vector<2x1xf32>
    %cst_35 = arith.constant 0.000000e+00 : f32
    %77 = vector.broadcast %cst_35 : f32 to vector<2x1xf32>
    %78 = arith.subf %77, %76 : vector<2x1xf32>
    %c0_36 = arith.constant 0 : index
    %c0_37 = arith.constant 0 : index
    %c0_38 = arith.constant 0 : index
    %79 = vector.load %arg10[%c0_36, %c0_37, %c0_38] : memref<1x2x128xf32, #tpu.memory_space<vmem>>, vector<1x2x128xf32>
    %80 = vector.shape_cast %79 : vector<1x2x128xf32> to vector<2x128xf32>
    %81 = arith.addf %57, %80 : vector<2x128xf32>
    %cst_39 = arith.constant dense<0xFF800000> : vector<2xf32>
    %82 = vector.multi_reduction <maximumf>, %81, %cst_39 [1] : vector<2x128xf32> to vector<2xf32>
    %83 = vector.shape_cast %82 : vector<2xf32> to vector<2x1xf32>
    %84 = vector.broadcast %83 : vector<2x1xf32> to vector<2x128xf32>
    %85 = arith.cmpf oeq, %81, %84 : vector<2x128xf32>
    %c128_i32 = arith.constant 128 : i32
    %86 = vector.broadcast %c128_i32 : i32 to vector<2x128xi32>
    %87 = arith.select %85, %53, %86 : vector<2x128xi1>, vector<2x128xi32>
    %cst_40 = arith.constant dense<2147483647> : vector<2xi32>
    %88 = vector.multi_reduction <minsi>, %87, %cst_40 [1] : vector<2x128xi32> to vector<2xi32>
    %89 = vector.shape_cast %88 : vector<2xi32> to vector<2x1xi32>
    %90 = vector.broadcast %89 : vector<2x1xi32> to vector<2x128xi32>
    %91 = arith.cmpi eq, %53, %90 : vector<2x128xi32>
    %92 = arith.extui %91 : vector<2x128xi1> to vector<2x128xi32>
    %93 = arith.sitofp %92 : vector<2x128xi32> to vector<2x128xf32>
    %94 = arith.mulf %67, %93 : vector<2x128xf32>
    %cst_41 = arith.constant dense<0.000000e+00> : vector<2xf32>
    %95 = vector.multi_reduction <add>, %94, %cst_41 [1] : vector<2x128xf32> to vector<2xf32>
    %96 = vector.shape_cast %95 : vector<2xf32> to vector<2x1xf32>
    %c6_i32_42 = arith.constant 6 : i32
    %97 = vector.broadcast %c6_i32_42 : i32 to vector<2x128xi32>
    %98 = arith.cmpi eq, %53, %97 : vector<2x128xi32>
    %cst_43 = arith.constant 0.000000e+00 : f32
    %99 = vector.broadcast %cst_43 : f32 to vector<2x128xf32>
    %100 = arith.select %98, %52, %99 : vector<2x128xi1>, vector<2x128xf32>
    %c0_i32_44 = arith.constant 0 : i32
    %101 = vector.broadcast %c0_i32_44 : i32 to vector<2x128xi32>
    %102 = arith.cmpi eq, %53, %101 : vector<2x128xi32>
    %103 = arith.sitofp %89 : vector<2x1xi32> to vector<2x1xf32>
    %cst_45 = arith.constant 0.000000e+00 : f32
    %104 = vector.shape_cast %103 : vector<2x1xf32> to vector<2x1xf32>
    %105 = vector.broadcast %104 : vector<2x1xf32> to vector<2x128xf32>
    %106 = vector.broadcast %cst_45 : f32 to vector<2x128xf32>
    %107 = arith.select %102, %105, %106 : vector<2x128xi1>, vector<2x128xf32>
    %108 = arith.addf %100, %107 : vector<2x128xf32>
    %c1_i32 = arith.constant 1 : i32
    %109 = vector.broadcast %c1_i32 : i32 to vector<2x128xi32>
    %110 = arith.cmpi eq, %53, %109 : vector<2x128xi32>
    %cst_46 = arith.constant 0.000000e+00 : f32
    %111 = vector.shape_cast %96 : vector<2x1xf32> to vector<2x1xf32>
    %112 = vector.broadcast %111 : vector<2x1xf32> to vector<2x128xf32>
    %113 = vector.broadcast %cst_46 : f32 to vector<2x128xf32>
    %114 = arith.select %110, %112, %113 : vector<2x128xi1>, vector<2x128xf32>
    %115 = arith.addf %108, %114 : vector<2x128xf32>
    %c2_i32 = arith.constant 2 : i32
    %116 = vector.broadcast %c2_i32 : i32 to vector<2x128xi32>
    %117 = arith.cmpi eq, %53, %116 : vector<2x128xi32>
    %cst_47 = arith.constant 0.000000e+00 : f32
    %118 = vector.shape_cast %78 : vector<2x1xf32> to vector<2x1xf32>
    %119 = vector.broadcast %118 : vector<2x1xf32> to vector<2x128xf32>
    %120 = vector.broadcast %cst_47 : f32 to vector<2x128xf32>
    %121 = arith.select %117, %119, %120 : vector<2x128xi1>, vector<2x128xf32>
    %122 = arith.addf %115, %121 : vector<2x128xf32>
    %c0_48 = arith.constant 0 : index
    %c0_49 = arith.constant 0 : index
    %c0_50 = arith.constant 0 : index
    %123 = vector.load %arg12[%c0_48, %c0_49, %c0_50] : memref<1x2x128xf32, #tpu.memory_space<vmem>>, vector<1x2x128xf32>
    %124 = vector.shape_cast %123 : vector<1x2x128xf32> to vector<2x128xf32>
    %125 = vector.shape_cast %122 : vector<2x128xf32> to vector<1x2x128xf32>
    tpu.vector_store %arg12[%c0_48, %c0_49, %c0_50], %125 {strides = array<i32>} : memref<1x2x128xf32, #tpu.memory_space<vmem>>, vector<1x2x128xf32>,
    return
  }
  func.func @transform_0(%arg0: i32, %arg1: i32) -> (i32, i32, i32) {
    %c0_i32 = arith.constant 0 : i32
    %c0_i32_0 = arith.constant 0 : i32
    return %arg1, %arg0, %c0_i32 : i32, i32, i32
  }
  func.func @transform_1(%arg0: i32, %arg1: i32) -> (i32, i32) {
    %c0_i32 = arith.constant 0 : i32
    %c0_i32_0 = arith.constant 0 : i32
    %c0_i32_1 = arith.constant 0 : i32
    return %c0_i32, %c0_i32_0 : i32, i32
  }
  func.func @transform_2(%arg0: i32, %arg1: i32) -> (i32, i32) {
    %c0_i32 = arith.constant 0 : i32
    %c0_i32_0 = arith.constant 0 : i32
    %c0_i32_1 = arith.constant 0 : i32
    return %c0_i32, %c0_i32_0 : i32, i32
  }
  func.func @transform_3(%arg0: i32, %arg1: i32) -> (i32, i32) {
    %c0_i32 = arith.constant 0 : i32
    %c0_i32_0 = arith.constant 0 : i32
    %c0_i32_1 = arith.constant 0 : i32
    return %c0_i32, %c0_i32_0 : i32, i32
  }
  func.func @transform_4(%arg0: i32, %arg1: i32) -> (i32, i32) {
    %c0_i32 = arith.constant 0 : i32
    %c0_i32_0 = arith.constant 0 : i32
    %c0_i32_1 = arith.constant 0 : i32
    return %c0_i32, %c0_i32_0 : i32, i32
  }
  func.func @transform_5(%arg0: i32, %arg1: i32) -> (i32, i32) {
    %c0_i32 = arith.constant 0 : i32
    %c0_i32_0 = arith.constant 0 : i32
    %c0_i32_1 = arith.constant 0 : i32
    return %c0_i32, %c0_i32_0 : i32, i32
  }
  func.func @transform_6(%arg0: i32, %arg1: i32) -> (i32, i32) {
    %c0_i32 = arith.constant 0 : i32
    %c0_i32_0 = arith.constant 0 : i32
    %c0_i32_1 = arith.constant 0 : i32
    return %c0_i32, %c0_i32_0 : i32, i32
  }
  func.func @transform_7(%arg0: i32, %arg1: i32) -> (i32, i32) {
    %c0_i32 = arith.constant 0 : i32
    %c0_i32_0 = arith.constant 0 : i32
    return %arg0, %c0_i32 : i32, i32
  }
  func.func @transform_8(%arg0: i32, %arg1: i32) -> (i32, i32, i32) {
    %c0_i32 = arith.constant 0 : i32
    %c0_i32_0 = arith.constant 0 : i32
    return %arg1, %arg0, %c0_i32 : i32, i32, i32
  }
  func.func @transform_9(%arg0: i32, %arg1: i32) -> (i32, i32, i32) {
    %c0_i32 = arith.constant 0 : i32
    %c0_i32_0 = arith.constant 0 : i32
    return %arg1, %arg0, %c0_i32 : i32, i32, i32
  }
  func.func @transform_10(%arg0: i32, %arg1: i32) -> (i32, i32, i32) {
    %c0_i32 = arith.constant 0 : i32
    %c0_i32_0 = arith.constant 0 : i32
    return %arg1, %arg0, %c0_i32 : i32, i32, i32
  }
  func.func @transform_11(%arg0: i32, %arg1: i32) -> (i32, i32, i32) {
    %c0_i32 = arith.constant 0 : i32
    %c0_i32_0 = arith.constant 0 : i32
    return %arg1, %arg0, %c0_i32 : i32, i32, i32
  }
}

</mosaic_0001>

<llo_original>
// kernel: gru_policy_rollout.1
$region0: #{gru_policy_rollout.1}
  #allocation0 [shape = 'u32[]', space=smem, size = 0x4, offset = 0x4, fixed_abs, tag = 'smem constant byte address 0x4 - core index']
  #allocation1 [shape = 'u32[72,128]{1,0:T(1,128)}', space=vmem, size = 0x9000, scoped, tag = 'internal scratch']
  #allocation2 [shape = 'f32[2,128]{1,0:T(2,128)}', space=vmem, size = 0x400, scoped, tag = 'scratch operand']
  %s0 = inlined_call_operand.vmem [shape: bf16[1,2,1024], index: 0, kind: input, shape index: {}]
  %s1 = inlined_call_operand.hbm [shape: bf16[1024,384], index: 1, kind: input, shape index: {}]
  %s2 = inlined_call_operand.vmem [shape: bf16[128,384], index: 2, kind: input, shape index: {}]
  %s3 = inlined_call_operand.vmem [shape: f32[1,384], index: 3, kind: input, shape index: {}]
  %s4 = inlined_call_operand.vmem [shape: f32[1,384], index: 4, kind: input, shape index: {}]
  %s5 = inlined_call_operand.vmem [shape: bf16[128,128], index: 5, kind: input, shape index: {}]
  %s6 = inlined_call_operand.vmem [shape: f32[1,128], index: 6, kind: input, shape index: {}]
  %s7 = inlined_call_operand.vmem [shape: f32[2,128], index: 7, kind: input, shape index: {}]
  %s8 = inlined_call_operand.vmem [shape: f32[1,2,128], index: 8, kind: input, shape index: {}]
  %s9 = inlined_call_operand.hbm [shape: f32[1,2,128], index: 9, kind: output, shape index: {0}]
  %s10 = inlined_call_operand.vmem [shape: f32[1,2,128], index: 10, kind: output, shape index: {1}]
  %s11 = inlined_call_operand.hbm [shape: f32[1,2,128], index: 11, kind: output, shape index: {2}]
  %12 = xla_tuple %s9, %s10, %s11
  %s13 = sld [smem:[#allocation0]]
  $region70: #{gru_policy_rollout.1} parent=0
    _
  %s15 = ssub.s32 1, %s13
  %s16 = scalar_select 0, %s15, %s13
  $region1: #{gru_policy_rollout.1} parent=0
    #allocation3 [shape = 'u8[786432]{0}', space=vmem, size = 0xc0000, scoped, tag = 'input window, operand 1, single buffered']
    #allocation4 [shape = 's32[1]{0}', space=sflag, size = 0x4, scoped, tag = 'scoped memory for gru_policy_rollout.1']
    #allocation5 [shape = 's32[1]{0}', space=sflag, size = 0x4, scoped, tag = 'scoped memory for gru_policy_rollout.1']
    #allocation6 [shape = 'u8[1024]{0}', space=vmem, size = 0x400, scoped, tag = 'output window, operand 0, single buffered']
    #allocation7 [shape = 'u8[1024]{0}', space=vmem, size = 0x400, scoped, tag = 'output window, operand 2, single buffered']
    #allocation8 [shape = 's32[1]{0}', space=sflag, size = 0x4, scoped, tag = 'scoped memory for gru_policy_rollout.1']
    %17 = vsyncpa [#allocation4], 0
    %18 = vsyncpa [#allocation5], 0
    %19 = vsyncpa [#allocation8], 0
    // Predicated region
    $region2: #{gru_policy_rollout.1} parent=1 // pred_check
      _
    $region3: #{gru_policy_rollout.1} parent=1 // pred_check_branch
      %21 = sbr.rel (0) target = $region5
    $region4: #{gru_policy_rollout.1} parent=1 // pred_region
      _
    $region5: #{gru_policy_rollout.1} parent=1 // pred_fallthru
      _
    // Predicated region
    $region6: #{gru_policy_rollout.1} parent=1 // pred_check
      _
    $region7: #{gru_policy_rollout.1} parent=1 // pred_check_branch
      %23 = sbr.rel (0) target = $region9
    $region8: #{gru_policy_rollout.1} parent=1 // pred_region
      %25 = vsyncadd [#allocation4], 0
      %s26 = sshll.u32 %s1, 4
      %s27 = int_to_ptr.hbm [resolvable:$true] %s26
      %s28 = sshll.u32 [#allocation3], 4
      %s29 = int_to_ptr.vmem [resolvable:$true] %s28
      %34 = dma.hbm_to_vmem [thread:$0]  %s27, 24576, %s29, [#allocation4], 192, 192, 12
    $region9: #{gru_policy_rollout.1} parent=1 // pred_fallthru
      _
    // Predicated region
    $region10: #{gru_policy_rollout.1} parent=1 // pred_check
      _
    $region11: #{gru_policy_rollout.1} parent=1 // pred_check_branch
      %36 = sbr.rel (0) target = $region13
    $region12: #{gru_policy_rollout.1} parent=1 // pred_region
      _
    $region13: #{gru_policy_rollout.1} parent=1 // pred_fallthru
      _
    // Predicated region
    $region14: #{gru_policy_rollout.1} parent=1 // pred_check
      _
    $region15: #{gru_policy_rollout.1} parent=1 // pred_check_branch
      %38 = sbr.rel (0) target = $region17
    $region16: #{gru_policy_rollout.1} parent=1 // pred_region
      _
    $region17: #{gru_policy_rollout.1} parent=1 // pred_fallthru
      _
    // Predicated region
    $region18: #{gru_policy_rollout.1} parent=1 // pred_check
      _
    $region19: #{gru_policy_rollout.1} parent=1 // pred_check_branch
      %40 = sbr.rel (0) target = $region21
    $region20: #{gru_policy_rollout.1} parent=1 // pred_region
      _
    $region21: #{gru_policy_rollout.1} parent=1 // pred_fallthru
      _
    // Predicated region
    $region22: #{gru_policy_rollout.1} parent=1 // pred_check
      _
    $region23: #{gru_policy_rollout.1} parent=1 // pred_check_branch
      %42 = sbr.rel (0) target = $region25
    $region24: #{gru_policy_rollout.1} parent=1 // pred_region
      _
    $region25: #{gru_policy_rollout.1} parent=1 // pred_fallthru
      _
    // Predicated region
    $region26: #{gru_policy_rollout.1} parent=1 // pred_check
      _
    $region27: #{gru_policy_rollout.1} parent=1 // pred_check_branch
      %44 = sbr.rel (0) target = $region29
    $region28: #{gru_policy_rollout.1} parent=1 // pred_region
      _
    $region29: #{gru_policy_rollout.1} parent=1 // pred_fallthru
      _
    // Predicated region
    $region30: #{gru_policy_rollout.1} parent=1 // pred_check
      _
    $region31: #{gru_policy_rollout.1} parent=1 // pred_check_branch
      %46 = sbr.rel (0) target = $region33
    $region32: #{gru_policy_rollout.1} parent=1 // pred_region
      _
    $region33: #{gru_policy_rollout.1} parent=1 // pred_fallthru
      _
    // Predicated region
    $region34: #{gru_policy_rollout.1} parent=1 // pred_check
      _
    $region35: #{gru_policy_rollout.1} parent=1 // pred_check_branch
      %48 = sbr.rel (0) target = $region37
    $region36: #{gru_policy_rollout.1} parent=1 // pred_region
      _
    $region37: #{gru_policy_rollout.1} parent=1 // pred_fallthru
      _
    // Predicated region
    $region38: #{gru_policy_rollout.1} parent=1 // pred_check
      _
    $region39: #{gru_policy_rollout.1} parent=1 // pred_check_branch
      %50 = sbr.rel (0) target = $region41
    $region40: #{gru_policy_rollout.1} parent=1 // pred_region
      %52 = dma.done [#allocation4], 24576
    $region41: #{gru_policy_rollout.1} parent=1 // pred_fallthru
      _
    %p53 = scmp.eq.s32.totalorder 0, 0
    // Predicated region
    $region42: #{gru_policy_rollout.1} parent=1 // pred_check
      %p54 = pneg %p53
    $region43: #{gru_policy_rollout.1} parent=1 // pred_check_branch
      %56 = sbr.rel (%p54) target = $region45
    $region44: #{gru_policy_rollout.1} parent=1 // pred_region
      %v57 = vld [vmem:[%s7] sm:$0x3]
      %58 = vst [vmem:[#allocation2] sm:$0x3] %v57
    $region45: #{gru_policy_rollout.1} parent=1 // pred_fallthru
      _
    %v59 = vld [vmem:[#allocation2] sm:$0x3]
    %v60 = vld [vmem:[%s0] sm:$0xff]
    %v61 = vld [vmem:[#allocation3] sm:$0xff]
    %v62 = vld [vmem:[#allocation3 + $0x8] sm:$0xf]
    %v63 = vld [vmem:[#allocation3 + $0xc] sm:$0xff]
    %v64 = vld [vmem:[#allocation3 + $0x14] sm:$0xf]
    %v65 = vld [vmem:[#allocation3 + $0x18] sm:$0xff]
    %v66 = vld [vmem:[#allocation3 + $0x20] sm:$0xf]
    %v67 = vld [vmem:[#allocation3 + $0x24] sm:$0xff]
    %v68 = vld [vmem:[#allocation3 + $0x2c] sm:$0xf]
    %v69 = vld [vmem:[#allocation3 + $0x30] sm:$0xff]
    %v70 = vld [vmem:[#allocation3 + $0x38] sm:$0xf]
    %v71 = vld [vmem:[#allocation3 + $0x3c] sm:$0xff]
    %v72 = vld [vmem:[#allocation3 + $0x44] sm:$0xf]
    %v73 = vld [vmem:[#allocation3 + $0x48] sm:$0xff]
    %v74 = vld [vmem:[#allocation3 + $0x50] sm:$0xf]
    %v75 = vld [vmem:[#allocation3 + $0x54] sm:$0xff]
    %v76 = vld [vmem:[#allocation3 + $0x5c] sm:$0xf]
    %v77 = vld [vmem:[#allocation3 + $0x60] sm:$0xff]
    %v78 = vld [vmem:[#allocation3 + $0x68] sm:$0xf]
    %v79 = vld [vmem:[#allocation3 + $0x6c] sm:$0xff]
    %v80 = vld [vmem:[#allocation3 + $0x74] sm:$0xf]
    %v81 = vld [vmem:[#allocation3 + $0x78] sm:$0xff]
    %v82 = vld [vmem:[#allocation3 + $0x80] sm:$0xf]
    %v83 = vld [vmem:[#allocation3 + $0x84] sm:$0xff]
    %v84 = vld [vmem:[#allocation3 + $0x8c] sm:$0xf]
    %v85 = vld [vmem:[#allocation3 + $0x90] sm:$0xff]
    %v86 = vld [vmem:[#allocation3 + $0x98] sm:$0xf]
    %v87 = vld [vmem:[#allocation3 + $0x9c] sm:$0xff]
    %v88 = vld [vmem:[#allocation3 + $0xa4] sm:$0xf]
    %v89 = vld [vmem:[#allocation3 + $0xa8] sm:$0xff]
    %v90 = vld [vmem:[#allocation3 + $0xb0] sm:$0xf]
    %v91 = vld [vmem:[#allocation3 + $0xb4] sm:$0xff]
    %v92 = vld [vmem:[#allocation3 + $0xbc] sm:$0xf]
    %v93 = vld [vmem:[#allocation3 + $0xc0] sm:$0xff]
    %v94 = vld [vmem:[#allocation3 + $0xc8] sm:$0xf]
    %v95 = vld [vmem:[#allocation3 + $0xcc] sm:$0xff]
    %v96 = vld [vmem:[#allocation3 + $0xd4] sm:$0xf]
    %v97 = vld [vmem:[#allocation3 + $0xd8] sm:$0xff]
    %v98 = vld [vmem:[#allocation3 + $0xe0] sm:$0xf]
    %v99 = vld [vmem:[#allocation3 + $0xe4] sm:$0xff]
    %v100 = vld [vmem:[#allocation3 + $0xec] sm:$0xf]
    %v101 = vld [vmem:[#allocation3 + $0xf0] sm:$0xff]
    %v102 = vld [vmem:[#allocation3 + $0xf8] sm:$0xf]
    %v103 = vld [vmem:[#allocation3 + $0xfc] sm:$0xff]
    %v104 = vld [vmem:[#allocation3 + $0x104] sm:$0xf]
    %v105 = vld [vmem:[#allocation3 + $0x108] sm:$0xff]
    %v106 = vld [vmem:[#allocation3 + $0x110] sm:$0xf]
    %v107 = vld [vmem:[#allocation3 + $0x114] sm:$0xff]
    %v108 = vld [vmem:[#allocation3 + $0x11c] sm:$0xf]
    %v109 = vld [vmem:[#allocation3 + $0x120] sm:$0xff]
    %v110 = vld [vmem:[#allocation3 + $0x128] sm:$0xf]
    %v111 = vld [vmem:[#allocation3 + $0x12c] sm:$0xff]
    %v112 = vld [vmem:[#allocation3 + $0x134] sm:$0xf]
    %v113 = vld [vmem:[#allocation3 + $0x138] sm:$0xff]
    %v114 = vld [vmem:[#allocation3 + $0x140] sm:$0xf]
    %v115 = vld [vmem:[#allocation3 + $0x144] sm:$0xff]
    %v116 = vld [vmem:[#allocation3 + $0x14c] sm:$0xf]
    %v117 = vld [vmem:[#allocation3 + $0x150] sm:$0xff]
    %v118 = vld [vmem:[#allocation3 + $0x158] sm:$0xf]
    %v119 = vld [vmem:[#allocation3 + $0x15c] sm:$0xff]
    %v120 = vld [vmem:[#allocation3 + $0x164] sm:$0xf]
    %v121 = vld [vmem:[#allocation3 + $0x168] sm:$0xff]
    %v122 = vld [vmem:[#allocation3 + $0x170] sm:$0xf]
    %v123 = vld [vmem:[#allocation3 + $0x174] sm:$0xff]
    %v124 = vld [vmem:[#allocation3 + $0x17c] sm:$0xf]
    %v125 = vld [vmem:[#allocation3 + $0x180] sm:$0xff]
    %v126 = vld [vmem:[#allocation3 + $0x188] sm:$0xf]
    %v127 = vld [vmem:[#allocation3 + $0x18c] sm:$0xff]
    %v128 = vld [vmem:[#allocation3 + $0x194] sm:$0xf]
    %v129 = vld [vmem:[#allocation3 + $0x198] sm:$0xff]
    %v130 = vld [vmem:[#allocation3 + $0x1a0] sm:$0xf]
    %v131 = vld [vmem:[#allocation3 + $0x1a4] sm:$0xff]
    %v132 = vld [vmem:[#allocation3 + $0x1ac] sm:$0xf]
    %v133 = vld [vmem:[#allocation3 + $0x1b0] sm:$0xff]
    %v134 = vld [vmem:[#allocation3 + $0x1b8] sm:$0xf]
    %v135 = vld [vmem:[#allocation3 + $0x1bc] sm:$0xff]
    %v136 = vld [vmem:[#allocation3 + $0x1c4] sm:$0xf]
    %v137 = vld [vmem:[#allocation3 + $0x1c8] sm:$0xff]
    %v138 = vld [vmem:[#allocation3 + $0x1d0] sm:$0xf]
    %v139 = vld [vmem:[#allocation3 + $0x1d4] sm:$0xff]
    %v140 = vld [vmem:[#allocation3 + $0x1dc] sm:$0xf]
    %v141 = vld [vmem:[#allocation3 + $0x1e0] sm:$0xff]
    %v142 = vld [vmem:[#allocation3 + $0x1e8] sm:$0xf]
    %v143 = vld [vmem:[#allocation3 + $0x1ec] sm:$0xff]
    %v144 = vld [vmem:[#allocation3 + $0x1f4] sm:$0xf]
    %v145 = vld [vmem:[#allocation3 + $0x1f8] sm:$0xff]
    %v146 = vld [vmem:[#allocation3 + $0x200] sm:$0xf]
    %v147 = vld [vmem:[#allocation3 + $0x204] sm:$0xff]
    %v148 = vld [vmem:[#allocation3 + $0x20c] sm:$0xf]
    %v149 = vld [vmem:[#allocation3 + $0x210] sm:$0xff]
    %v150 = vld [vmem:[#allocation3 + $0x218] sm:$0xf]
    %v151 = vld [vmem:[#allocation3 + $0x21c] sm:$0xff]
    %v152 = vld [vmem:[#allocation3 + $0x224] sm:$0xf]
    %v153 = vld [vmem:[#allocation3 + $0x228] sm:$0xff]
    %v154 = vld [vmem:[#allocation3 + $0x230] sm:$0xf]
    %v155 = vld [vmem:[#allocation3 + $0x234] sm:$0xff]
    %v156 = vld [vmem:[#allocation3 + $0x23c] sm:$0xf]
    %v157 = vld [vmem:[#allocation3 + $0x240] sm:$0xff]
    %v158 = vld [vmem:[#allocation3 + $0x248] sm:$0xf]
    %v159 = vld [vmem:[#allocation3 + $0x24c] sm:$0xff]
    %v160 = vld [vmem:[#allocation3 + $0x254] sm:$0xf]
    %v161 = vld [vmem:[#allocation3 + $0x258] sm:$0xff]
    %v162 = vld [vmem:[#allocation3 + $0x260] sm:$0xf]
    %v163 = vld [vmem:[#allocation3 + $0x264] sm:$0xff]
    %v164 = vld [vmem:[#allocation3 + $0x26c] sm:$0xf]
    %v165 = vld [vmem:[#allocation3 + $0x270] sm:$0xff]
    %v166 = vld [vmem:[#allocation3 + $0x278] sm:$0xf]
    %v167 = vld [vmem:[#allocation3 + $0x27c] sm:$0xff]
    %v168 = vld [vmem:[#allocation3 + $0x284] sm:$0xf]
    %v169 = vld [vmem:[#allocation3 + $0x288] sm:$0xff]
    %v170 = vld [vmem:[#allocation3 + $0x290] sm:$0xf]
    %v171 = vld [vmem:[#allocation3 + $0x294] sm:$0xff]
    %v172 = vld [vmem:[#allocation3 + $0x29c] sm:$0xf]
    %v173 = vld [vmem:[#allocation3 + $0x2a0] sm:$0xff]
    %v174 = vld [vmem:[#allocation3 + $0x2a8] sm:$0xf]
    %v175 = vld [vmem:[#allocation3 + $0x2ac] sm:$0xff]
    %v176 = vld [vmem:[#allocation3 + $0x2b4] sm:$0xf]
    %v177 = vld [vmem:[#allocation3 + $0x2b8] sm:$0xff]
    %v178 = vld [vmem:[#allocation3 + $0x2c0] sm:$0xf]
    %v179 = vld [vmem:[#allocation3 + $0x2c4] sm:$0xff]
    %v180 = vld [vmem:[#allocation3 + $0x2cc] sm:$0xf]
    %v181 = vld [vmem:[#allocation3 + $0x2d0] sm:$0xff]
    %v182 = vld [vmem:[#allocation3 + $0x2d8] sm:$0xf]
    %v183 = vld [vmem:[#allocation3 + $0x2dc] sm:$0xff]
    %v184 = vld [vmem:[#allocation3 + $0x2e4] sm:$0xf]
    %v185 = vld [vmem:[#allocation3 + $0x2e8] sm:$0xff]
    %v186 = vld [vmem:[#allocation3 + $0x2f0] sm:$0xf]
    %v187 = vld [vmem:[#allocation3 + $0x2f4] sm:$0xff]
    %v188 = vld [vmem:[#allocation3 + $0x2fc] sm:$0xf]
    %v189 = vld [vmem:[#allocation3 + $0x300] sm:$0xff]
    %v190 = vld [vmem:[#allocation3 + $0x308] sm:$0xf]
    %v191 = vld [vmem:[#allocation3 + $0x30c] sm:$0xff]
    %v192 = vld [vmem:[#allocation3 + $0x314] sm:$0xf]
    %v193 = vld [vmem:[#allocation3 + $0x318] sm:$0xff]
    %v194 = vld [vmem:[#allocation3 + $0x320] sm:$0xf]
    %v195 = vld [vmem:[#allocation3 + $0x324] sm:$0xff]
    %v196 = vld [vmem:[#allocation3 + $0x32c] sm:$0xf]
    %v197 = vld [vmem:[#allocation3 + $0x330] sm:$0xff]
    %v198 = vld [vmem:[#allocation3 + $0x338] sm:$0xf]
    %v199 = vld [vmem:[#allocation3 + $0x33c] sm:$0xff]
    %v200 = vld [vmem:[#allocation3 + $0x344] sm:$0xf]
    %v201 = vld [vmem:[#allocation3 + $0x348] sm:$0xff]
    %v202 = vld [vmem:[#allocation3 + $0x350] sm:$0xf]
    %v203 = vld [vmem:[#allocation3 + $0x354] sm:$0xff]
    %v204 = vld [vmem:[#allocation3 + $0x35c] sm:$0xf]
    %v205 = vld [vmem:[#allocation3 + $0x360] sm:$0xff]
    %v206 = vld [vmem:[#allocation3 + $0x368] sm:$0xf]
    %v207 = vld [vmem:[#allocation3 + $0x36c] sm:$0xff]
    %v208 = vld [vmem:[#allocation3 + $0x374] sm:$0xf]
    %v209 = vld [vmem:[#allocation3 + $0x378] sm:$0xff]
    %v210 = vld [vmem:[#allocation3 + $0x380] sm:$0xf]
    %v211 = vld [vmem:[#allocation3 + $0x384] sm:$0xff]
    %v212 = vld [vmem:[#allocation3 + $0x38c] sm:$0xf]
    %v213 = vld [vmem:[#allocation3 + $0x390] sm:$0xff]
    %v214 = vld [vmem:[#allocation3 + $0x398] sm:$0xf]
    %v215 = vld [vmem:[#allocation3 + $0x39c] sm:$0xff]
    %v216 = vld [vmem:[#allocation3 + $0x3a4] sm:$0xf]
    %v217 = vld [vmem:[#allocation3 + $0x3a8] sm:$0xff]
    %v218 = vld [vmem:[#allocation3 + $0x3b0] sm:$0xf]
    %v219 = vld [vmem:[#allocation3 + $0x3b4] sm:$0xff]
    %v220 = vld [vmem:[#allocation3 + $0x3bc] sm:$0xf]
    %v221 = vld [vmem:[#allocation3 + $0x3c0] sm:$0xff]
    %v222 = vld [vmem:[#allocation3 + $0x3c8] sm:$0xf]
    %v223 = vld [vmem:[#allocation3 + $0x3cc] sm:$0xff]
    %v224 = vld [vmem:[#allocation3 + $0x3d4] sm:$0xf]
    %v225 = vld [vmem:[#allocation3 + $0x3d8] sm:$0xff]
    %v226 = vld [vmem:[#allocation3 + $0x3e0] sm:$0xf]
    %v227 = vld [vmem:[#allocation3 + $0x3e4] sm:$0xff]
    %v228 = vld [vmem:[#allocation3 + $0x3ec] sm:$0xf]
    %v229 = vld [vmem:[#allocation3 + $0x3f0] sm:$0xff]
    %v230 = vld [vmem:[#allocation3 + $0x3f8] sm:$0xf]
    %v231 = vld [vmem:[#allocation3 + $0x3fc] sm:$0xff]
    %v232 = vld [vmem:[#allocation3 + $0x404] sm:$0xf]
    %v233 = vld [vmem:[#allocation3 + $0x408] sm:$0xff]
    %v234 = vld [vmem:[#allocation3 + $0x410] sm:$0xf]
    %v235 = vld [vmem:[#allocation3 + $0x414] sm:$0xff]
    %v236 = vld [vmem:[#allocation3 + $0x41c] sm:$0xf]
    %v237 = vld [vmem:[#allocation3 + $0x420] sm:$0xff]
    %v238 = vld [vmem:[#allocation3 + $0x428] sm:$0xf]
    %v239 = vld [vmem:[#allocation3 + $0x42c] sm:$0xff]
    %v240 = vld [vmem:[#allocation3 + $0x434] sm:$0xf]
    %v241 = vld [vmem:[#allocation3 + $0x438] sm:$0xff]
    %v242 = vld [vmem:[#allocation3 + $0x440] sm:$0xf]
    %v243 = vld [vmem:[#allocation3 + $0x444] sm:$0xff]
    %v244 = vld [vmem:[#allocation3 + $0x44c] sm:$0xf]
    %v245 = vld [vmem:[#allocation3 + $0x450] sm:$0xff]
    %v246 = vld [vmem:[#allocation3 + $0x458] sm:$0xf]
    %v247 = vld [vmem:[#allocation3 + $0x45c] sm:$0xff]
    %v248 = vld [vmem:[#allocation3 + $0x464] sm:$0xf]
    %v249 = vld [vmem:[#allocation3 + $0x468] sm:$0xff]
    %v250 = vld [vmem:[#allocation3 + $0x470] sm:$0xf]
    %v251 = vld [vmem:[#allocation3 + $0x474] sm:$0xff]
    %v252 = vld [vmem:[#allocation3 + $0x47c] sm:$0xf]
    %v253 = vld [vmem:[#allocation3 + $0x480] sm:$0xff]
    %v254 = vld [vmem:[#allocation3 + $0x488] sm:$0xf]
    %v255 = vld [vmem:[#allocation3 + $0x48c] sm:$0xff]
    %v256 = vld [vmem:[#allocation3 + $0x494] sm:$0xf]
    %v257 = vld [vmem:[#allocation3 + $0x498] sm:$0xff]
    %v258 = vld [vmem:[#allocation3 + $0x4a0] sm:$0xf]
    %v259 = vld [vmem:[#allocation3 + $0x4a4] sm:$0xff]
    %v260 = vld [vmem:[#allocation3 + $0x4ac] sm:$0xf]
    %v261 = vld [vmem:[#allocation3 + $0x4b0] sm:$0xff]
    %v262 = vld [vmem:[#allocation3 + $0x4b8] sm:$0xf]
    %v263 = vld [vmem:[#allocation3 + $0x4bc] sm:$0xff]
    %v264 = vld [vmem:[#allocation3 + $0x4c4] sm:$0xf]
    %v265 = vld [vmem:[#allocation3 + $0x4c8] sm:$0xff]
    %v266 = vld [vmem:[#allocation3 + $0x4d0] sm:$0xf]
    %v267 = vld [vmem:[#allocation3 + $0x4d4] sm:$0xff]
    %v268 = vld [vmem:[#allocation3 + $0x4dc] sm:$0xf]
    %v269 = vld [vmem:[#allocation3 + $0x4e0] sm:$0xff]
    %v270 = vld [vmem:[#allocation3 + $0x4e8] sm:$0xf]
    %v271 = vld [vmem:[#allocation3 + $0x4ec] sm:$0xff]
    %v272 = vld [vmem:[#allocation3 + $0x4f4] sm:$0xf]
    %v273 = vld [vmem:[#allocation3 + $0x4f8] sm:$0xff]
    %v274 = vld [vmem:[#allocation3 + $0x500] sm:$0xf]
    %v275 = vld [vmem:[#allocation3 + $0x504] sm:$0xff]
    %v276 = vld [vmem:[#allocation3 + $0x50c] sm:$0xf]
    %v277 = vld [vmem:[#allocation3 + $0x510] sm:$0xff]
    %v278 = vld [vmem:[#allocation3 + $0x518] sm:$0xf]
    %v279 = vld [vmem:[#allocation3 + $0x51c] sm:$0xff]
    %v280 = vld [vmem:[#allocation3 + $0x524] sm:$0xf]
    %v281 = vld [vmem:[#allocation3 + $0x528] sm:$0xff]
    %v282 = vld [vmem:[#allocation3 + $0x530] sm:$0xf]
    %v283 = vld [vmem:[#allocation3 + $0x534] sm:$0xff]
    %v284 = vld [vmem:[#allocation3 + $0x53c] sm:$0xf]
    %v285 = vld [vmem:[#allocation3 + $0x540] sm:$0xff]
    %v286 = vld [vmem:[#allocation3 + $0x548] sm:$0xf]
    %v287 = vld [vmem:[#allocation3 + $0x54c] sm:$0xff]
    %v288 = vld [vmem:[#allocation3 + $0x554] sm:$0xf]
    %v289 = vld [vmem:[#allocation3 + $0x558] sm:$0xff]
    %v290 = vld [vmem:[#allocation3 + $0x560] sm:$0xf]
    %v291 = vld [vmem:[#allocation3 + $0x564] sm:$0xff]
    %v292 = vld [vmem:[#allocation3 + $0x56c] sm:$0xf]
    %v293 = vld [vmem:[#allocation3 + $0x570] sm:$0xff]
    %v294 = vld [vmem:[#allocation3 + $0x578] sm:$0xf]
    %v295 = vld [vmem:[#allocation3 + $0x57c] sm:$0xff]
    %v296 = vld [vmem:[#allocation3 + $0x584] sm:$0xf]
    %v297 = vld [vmem:[#allocation3 + $0x588] sm:$0xff]
    %v298 = vld [vmem:[#allocation3 + $0x590] sm:$0xf]
    %v299 = vld [vmem:[#allocation3 + $0x594] sm:$0xff]
    %v300 = vld [vmem:[#allocation3 + $0x59c] sm:$0xf]
    %v301 = vld [vmem:[#allocation3 + $0x5a0] sm:$0xff]
    %v302 = vld [vmem:[#allocation3 + $0x5a8] sm:$0xf]
    %v303 = vld [vmem:[#allocation3 + $0x5ac] sm:$0xff]
    %v304 = vld [vmem:[#allocation3 + $0x5b4] sm:$0xf]
    %v305 = vld [vmem:[#allocation3 + $0x5b8] sm:$0xff]
    %v306 = vld [vmem:[#allocation3 + $0x5c0] sm:$0xf]
    %v307 = vld [vmem:[#allocation3 + $0x5c4] sm:$0xff]
    %v308 = vld [vmem:[#allocation3 + $0x5cc] sm:$0xf]
    %v309 = vld [vmem:[#allocation3 + $0x5d0] sm:$0xff]
    %v310 = vld [vmem:[#allocation3 + $0x5d8] sm:$0xf]
    %v311 = vld [vmem:[#allocation3 + $0x5dc] sm:$0xff]
    %v312 = vld [vmem:[#allocation3 + $0x5e4] sm:$0xf]
    %v313 = vld [vmem:[#allocation3 + $0x5e8] sm:$0xff]
    %v314 = vld [vmem:[#allocation3 + $0x5f0] sm:$0xf]
    %v315 = vld [vmem:[#allocation3 + $0x5f4] sm:$0xff]
    %v316 = vld [vmem:[#allocation3 + $0x5fc] sm:$0xf]
    %v317 = vld [vmem:[%s3] sm:$0x7]
    %v319 = vperm.slane %v317, 0
    %v320 = vperm.slane %v317, 1
    %v321 = vperm.slane %v317, 2
    %326 = vst [vmem:[#allocation1] ss:$9 sm:$0xff] %v60
    %v327 = vld [vmem:[#allocation1] sm:$0xff]
    %v328 = vld [vmem:[#allocation1 + $0x9] sm:$0xff]
    %v329 = vld [vmem:[#allocation1 + $0x12] sm:$0xff]
    %v330 = vld [vmem:[#allocation1 + $0x1b] sm:$0xff]
    %v331 = vld [vmem:[#allocation1 + $0x24] sm:$0xff]
    %v332 = vld [vmem:[#allocation1 + $0x2d] sm:$0xff]
    %v333 = vld [vmem:[#allocation1 + $0x36] sm:$0xff]
    %v334 = vld [vmem:[#allocation1 + $0x3f] sm:$0xff]
    %v599 = vunpack.c.l.b16 %v61
    %v600 = vunpack.c.h.b16 %v61
    %v601 = vunpack.c.l.b16 %v62
    %v602 = vunpack.c.l.b16 %v63
    %v603 = vunpack.c.h.b16 %v63
    %v604 = vunpack.c.l.b16 %v64
    %v605 = vunpack.c.l.b16 %v65
    %v606 = vunpack.c.h.b16 %v65
    %v607 = vunpack.c.l.b16 %v66
    %v608 = vunpack.c.l.b16 %v67
    %v609 = vunpack.c.h.b16 %v67
    %v610 = vunpack.c.l.b16 %v68
    %v611 = vunpack.c.l.b16 %v69
    %v612 = vunpack.c.h.b16 %v69
    %v613 = vunpack.c.l.b16 %v70
    %v614 = vunpack.c.l.b16 %v71
    %v615 = vunpack.c.h.b16 %v71
    %v616 = vunpack.c.l.b16 %v72
    %v617 = vunpack.c.l.b16 %v73
    %v618 = vunpack.c.h.b16 %v73
    %v619 = vunpack.c.l.b16 %v74
    %v620 = vunpack.c.l.b16 %v75
    %v621 = vunpack.c.h.b16 %v75
    %v622 = vunpack.c.l.b16 %v76
    %v623 = vunpack.c.l.b16 %v77
    %v624 = vunpack.c.h.b16 %v77
    %v625 = vunpack.c.l.b16 %v78
    %v626 = vunpack.c.l.b16 %v79
    %v627 = vunpack.c.h.b16 %v79
    %v628 = vunpack.c.l.b16 %v80
    %v629 = vunpack.c.l.b16 %v81
    %v630 = vunpack.c.h.b16 %v81
    %v631 = vunpack.c.l.b16 %v82
    %v632 = vunpack.c.l.b16 %v83
    %v633 = vunpack.c.h.b16 %v83
    %v634 = vunpack.c.l.b16 %v84
    %v635 = vunpack.c.l.b16 %v85
    %v636 = vunpack.c.h.b16 %v85
    %v637 = vunpack.c.l.b16 %v86
    %v638 = vunpack.c.l.b16 %v87
    %v639 = vunpack.c.h.b16 %v87
    %v640 = vunpack.c.l.b16 %v88
    %v641 = vunpack.c.l.b16 %v89
    %v642 = vunpack.c.h.b16 %v89
    %v643 = vunpack.c.l.b16 %v90
    %v644 = vunpack.c.l.b16 %v91
    %v645 = vunpack.c.h.b16 %v91
    %v646 = vunpack.c.l.b16 %v92
    %v647 = vunpack.c.l.b16 %v93
    %v648 = vunpack.c.h.b16 %v93
    %v649 = vunpack.c.l.b16 %v94
    %v650 = vunpack.c.l.b16 %v95
    %v651 = vunpack.c.h.b16 %v95
    %v652 = vunpack.c.l.b16 %v96
    %v653 = vunpack.c.l.b16 %v97
    %v654 = vunpack.c.h.b16 %v97
    %v655 = vunpack.c.l.b16 %v98
    %v656 = vunpack.c.l.b16 %v99
    %v657 = vunpack.c.h.b16 %v99
    %v658 = vunpack.c.l.b16 %v100
    %v659 = vunpack.c.l.b16 %v101
    %v660 = vunpack.c.h.b16 %v101
    %v661 = vunpack.c.l.b16 %v102
    %v662 = vunpack.c.l.b16 %v103
    %v663 = vunpack.c.h.b16 %v103
    %v664 = vunpack.c.l.b16 %v104
    %v665 = vunpack.c.l.b16 %v105
    %v666 = vunpack.c.h.b16 %v105
    %v667 = vunpack.c.l.b16 %v106
    %v668 = vunpack.c.l.b16 %v107
    %v669 = vunpack.c.h.b16 %v107
    %v670 = vunpack.c.l.b16 %v108
    %v671 = vunpack.c.l.b16 %v109
    %v672 = vunpack.c.h.b16 %v109
    %v673 = vunpack.c.l.b16 %v110
    %v674 = vunpack.c.l.b16 %v111
    %v675 = vunpack.c.h.b16 %v111
    %v676 = vunpack.c.l.b16 %v112
    %v677 = vunpack.c.l.b16 %v113
    %v678 = vunpack.c.h.b16 %v113
    %v679 = vunpack.c.l.b16 %v114
    %v680 = vunpack.c.l.b16 %v115
    %v681 = vunpack.c.h.b16 %v115
    %v682 = vunpack.c.l.b16 %v116
    %v683 = vunpack.c.l.b16 %v117
    %v684 = vunpack.c.h.b16 %v117
    %v685 = vunpack.c.l.b16 %v118
    %v686 = vunpack.c.l.b16 %v119
    %v687 = vunpack.c.h.b16 %v119
    %v688 = vunpack.c.l.b16 %v120
    %v689 = vunpack.c.l.b16 %v121
    %v690 = vunpack.c.h.b16 %v121
    %v691 = vunpack.c.l.b16 %v122
    %v692 = vunpack.c.l.b16 %v123
    %v693 = vunpack.c.h.b16 %v123
    %v694 = vunpack.c.l.b16 %v124
    %v695 = vunpack.c.l.b16 %v125
    %v696 = vunpack.c.h.b16 %v125
    %v697 = vunpack.c.l.b16 %v126
    %v698 = vunpack.c.l.b16 %v127
    %v699 = vunpack.c.h.b16 %v127
    %v700 = vunpack.c.l.b16 %v128
    %v701 = vunpack.c.l.b16 %v129
    %v702 = vunpack.c.h.b16 %v129
    %v703 = vunpack.c.l.b16 %v130
    %v704 = vunpack.c.l.b16 %v131
    %v705 = vunpack.c.h.b16 %v131
    %v706 = vunpack.c.l.b16 %v132
    %v707 = vunpack.c.l.b16 %v133
    %v708 = vunpack.c.h.b16 %v133
    %v709 = vunpack.c.l.b16 %v134
    %v710 = vunpack.c.l.b16 %v135
    %v711 = vunpack.c.h.b16 %v135
    %v712 = vunpack.c.l.b16 %v136
    %v713 = vunpack.c.l.b16 %v137
    %v714 = vunpack.c.h.b16 %v137
    %v715 = vunpack.c.l.b16 %v138
    %v716 = vunpack.c.l.b16 %v139
    %v717 = vunpack.c.h.b16 %v139
    %v718 = vunpack.c.l.b16 %v140
    %v719 = vunpack.c.l.b16 %v141
    %v720 = vunpack.c.h.b16 %v141
    %v721 = vunpack.c.l.b16 %v142
    %v722 = vunpack.c.l.b16 %v143
    %v723 = vunpack.c.h.b16 %v143
    %v724 = vunpack.c.l.b16 %v144
    %v725 = vunpack.c.l.b16 %v145
    %v726 = vunpack.c.h.b16 %v145
    %v727 = vunpack.c.l.b16 %v146
    %v728 = vunpack.c.l.b16 %v147
    %v729 = vunpack.c.h.b16 %v147
    %v730 = vunpack.c.l.b16 %v148
    %v731 = vunpack.c.l.b16 %v149
    %v732 = vunpack.c.h.b16 %v149
    %v733 = vunpack.c.l.b16 %v150
    %v734 = vunpack.c.l.b16 %v151
    %v735 = vunpack.c.h.b16 %v151
    %v736 = vunpack.c.l.b16 %v152
    %v737 = vunpack.c.l.b16 %v153
    %v738 = vunpack.c.h.b16 %v153
    %v739 = vunpack.c.l.b16 %v154
    %v740 = vunpack.c.l.b16 %v155
    %v741 = vunpack.c.h.b16 %v155
    %v742 = vunpack.c.l.b16 %v156
    %v743 = vunpack.c.l.b16 %v157
    %v744 = vunpack.c.h.b16 %v157
    %v745 = vunpack.c.l.b16 %v158
    %v746 = vunpack.c.l.b16 %v159
    %v747 = vunpack.c.h.b16 %v159
    %v748 = vunpack.c.l.b16 %v160
    %v749 = vunpack.c.l.b16 %v161
    %v750 = vunpack.c.h.b16 %v161
    %v751 = vunpack.c.l.b16 %v162
    %v752 = vunpack.c.l.b16 %v163
    %v753 = vunpack.c.h.b16 %v163
    %v754 = vunpack.c.l.b16 %v164
    %v755 = vunpack.c.l.b16 %v165
    %v756 = vunpack.c.h.b16 %v165
    %v757 = vunpack.c.l.b16 %v166
    %v758 = vunpack.c.l.b16 %v167
    %v759 = vunpack.c.h.b16 %v167
    %v760 = vunpack.c.l.b16 %v168
    %v761 = vunpack.c.l.b16 %v169
    %v762 = vunpack.c.h.b16 %v169
    %v763 = vunpack.c.l.b16 %v170
    %v764 = vunpack.c.l.b16 %v171
    %v765 = vunpack.c.h.b16 %v171
    %v766 = vunpack.c.l.b16 %v172
    %v767 = vunpack.c.l.b16 %v173
    %v768 = vunpack.c.h.b16 %v173
    %v769 = vunpack.c.l.b16 %v174
    %v770 = vunpack.c.l.b16 %v175
    %v771 = vunpack.c.h.b16 %v175
    %v772 = vunpack.c.l.b16 %v176
    %v773 = vunpack.c.l.b16 %v177
    %v774 = vunpack.c.h.b16 %v177
    %v775 = vunpack.c.l.b16 %v178
    %v776 = vunpack.c.l.b16 %v179
    %v777 = vunpack.c.h.b16 %v179
    %v778 = vunpack.c.l.b16 %v180
    %v779 = vunpack.c.l.b16 %v181
    %v780 = vunpack.c.h.b16 %v181
    %v781 = vunpack.c.l.b16 %v182
    %v782 = vunpack.c.l.b16 %v183
    %v783 = vunpack.c.h.b16 %v183
    %v784 = vunpack.c.l.b16 %v184
    %v785 = vunpack.c.l.b16 %v185
    %v786 = vunpack.c.h.b16 %v185
    %v787 = vunpack.c.l.b16 %v186
    %v788 = vunpack.c.l.b16 %v187
    %v789 = vunpack.c.h.b16 %v187
    %v790 = vunpack.c.l.b16 %v188
    %v791 = vunpack.c.l.b16 %v189
    %v792 = vunpack.c.h.b16 %v189
    %v793 = vunpack.c.l.b16 %v190
    %v794 = vunpack.c.l.b16 %v191
    %v795 = vunpack.c.h.b16 %v191
    %v796 = vunpack.c.l.b16 %v192
    %v797 = vunpack.c.l.b16 %v193
    %v798 = vunpack.c.h.b16 %v193
    %v799 = vunpack.c.l.b16 %v194
    %v800 = vunpack.c.l.b16 %v195
    %v801 = vunpack.c.h.b16 %v195
    %v802 = vunpack.c.l.b16 %v196
    %v803 = vunpack.c.l.b16 %v197
    %v804 = vunpack.c.h.b16 %v197
    %v805 = vunpack.c.l.b16 %v198
    %v806 = vunpack.c.l.b16 %v199
    %v807 = vunpack.c.h.b16 %v199
    %v808 = vunpack.c.l.b16 %v200
    %v809 = vunpack.c.l.b16 %v201
    %v810 = vunpack.c.h.b16 %v201
    %v811 = vunpack.c.l.b16 %v202
    %v812 = vunpack.c.l.b16 %v203
    %v813 = vunpack.c.h.b16 %v203
    %v814 = vunpack.c.l.b16 %v204
    %v815 = vunpack.c.l.b16 %v205
    %v816 = vunpack.c.h.b16 %v205
    %v817 = vunpack.c.l.b16 %v206
    %v818 = vunpack.c.l.b16 %v207
    %v819 = vunpack.c.h.b16 %v207
    %v820 = vunpack.c.l.b16 %v208
    %v821 = vunpack.c.l.b16 %v209
    %v822 = vunpack.c.h.b16 %v209
    %v823 = vunpack.c.l.b16 %v210
    %v824 = vunpack.c.l.b16 %v211
    %v825 = vunpack.c.h.b16 %v211
    %v826 = vunpack.c.l.b16 %v212
    %v827 = vunpack.c.l.b16 %v213
    %v828 = vunpack.c.h.b16 %v213
    %v829 = vunpack.c.l.b16 %v214
    %v830 = vunpack.c.l.b16 %v215
    %v831 = vunpack.c.h.b16 %v215
    %v832 = vunpack.c.l.b16 %v216
    %v833 = vunpack.c.l.b16 %v217
    %v834 = vunpack.c.h.b16 %v217
    %v835 = vunpack.c.l.b16 %v218
    %v836 = vunpack.c.l.b16 %v219
    %v837 = vunpack.c.h.b16 %v219
    %v838 = vunpack.c.l.b16 %v220
    %v839 = vunpack.c.l.b16 %v221
    %v840 = vunpack.c.h.b16 %v221
    %v841 = vunpack.c.l.b16 %v222
    %v842 = vunpack.c.l.b16 %v223
    %v843 = vunpack.c.h.b16 %v223
    %v844 = vunpack.c.l.b16 %v224
    %v845 = vunpack.c.l.b16 %v225
    %v846 = vunpack.c.h.b16 %v225
    %v847 = vunpack.c.l.b16 %v226
    %v848 = vunpack.c.l.b16 %v227
    %v849 = vunpack.c.h.b16 %v227
    %v850 = vunpack.c.l.b16 %v228
    %v851 = vunpack.c.l.b16 %v229
    %v852 = vunpack.c.h.b16 %v229
    %v853 = vunpack.c.l.b16 %v230
    %v854 = vunpack.c.l.b16 %v231
    %v855 = vunpack.c.h.b16 %v231
    %v856 = vunpack.c.l.b16 %v232
    %v857 = vunpack.c.l.b16 %v233
    %v858 = vunpack.c.h.b16 %v233
    %v859 = vunpack.c.l.b16 %v234
    %v860 = vunpack.c.l.b16 %v235
    %v861 = vunpack.c.h.b16 %v235
    %v862 = vunpack.c.l.b16 %v236
    %v863 = vunpack.c.l.b16 %v237
    %v864 = vunpack.c.h.b16 %v237
    %v865 = vunpack.c.l.b16 %v238
    %v866 = vunpack.c.l.b16 %v239
    %v867 = vunpack.c.h.b16 %v239
    %v868 = vunpack.c.l.b16 %v240
    %v869 = vunpack.c.l.b16 %v241
    %v870 = vunpack.c.h.b16 %v241
    %v871 = vunpack.c.l.b16 %v242
    %v872 = vunpack.c.l.b16 %v243
    %v873 = vunpack.c.h.b16 %v243
    %v874 = vunpack.c.l.b16 %v244
    %v875 = vunpack.c.l.b16 %v245
    %v876 = vunpack.c.h.b16 %v245
    %v877 = vunpack.c.l.b16 %v246
    %v878 = vunpack.c.l.b16 %v247
    %v879 = vunpack.c.h.b16 %v247
    %v880 = vunpack.c.l.b16 %v248
    %v881 = vunpack.c.l.b16 %v249
    %v882 = vunpack.c.h.b16 %v249
    %v883 = vunpack.c.l.b16 %v250
    %v884 = vunpack.c.l.b16 %v251
    %v885 = vunpack.c.h.b16 %v251
    %v886 = vunpack.c.l.b16 %v252
    %v887 = vunpack.c.l.b16 %v253
    %v888 = vunpack.c.h.b16 %v253
    %v889 = vunpack.c.l.b16 %v254
    %v890 = vunpack.c.l.b16 %v255
    %v891 = vunpack.c.h.b16 %v255
    %v892 = vunpack.c.l.b16 %v256
    %v893 = vunpack.c.l.b16 %v257
    %v894 = vunpack.c.h.b16 %v257
    %v895 = vunpack.c.l.b16 %v258
    %v896 = vunpack.c.l.b16 %v259
    %v897 = vunpack.c.h.b16 %v259
    %v898 = vunpack.c.l.b16 %v260
    %v899 = vunpack.c.l.b16 %v261
    %v900 = vunpack.c.h.b16 %v261
    %v901 = vunpack.c.l.b16 %v262
    %v902 = vunpack.c.l.b16 %v263
    %v903 = vunpack.c.h.b16 %v263
    %v904 = vunpack.c.l.b16 %v264
    %v905 = vunpack.c.l.b16 %v265
    %v906 = vunpack.c.h.b16 %v265
    %v907 = vunpack.c.l.b16 %v266
    %v908 = vunpack.c.l.b16 %v267
    %v909 = vunpack.c.h.b16 %v267
    %v910 = vunpack.c.l.b16 %v268
    %v911 = vunpack.c.l.b16 %v269
    %v912 = vunpack.c.h.b16 %v269
    %v913 = vunpack.c.l.b16 %v270
    %v914 = vunpack.c.l.b16 %v271
    %v915 = vunpack.c.h.b16 %v271
    %v916 = vunpack.c.l.b16 %v272
    %v917 = vunpack.c.l.b16 %v273
    %v918 = vunpack.c.h.b16 %v273
    %v919 = vunpack.c.l.b16 %v274
    %v920 = vunpack.c.l.b16 %v275
    %v921 = vunpack.c.h.b16 %v275
    %v922 = vunpack.c.l.b16 %v276
    %v923 = vunpack.c.l.b16 %v277
    %v924 = vunpack.c.h.b16 %v277
    %v925 = vunpack.c.l.b16 %v278
    %v926 = vunpack.c.l.b16 %v279
    %v927 = vunpack.c.h.b16 %v279
    %v928 = vunpack.c.l.b16 %v280
    %v929 = vunpack.c.l.b16 %v281
    %v930 = vunpack.c.h.b16 %v281
    %v931 = vunpack.c.l.b16 %v282
    %v932 = vunpack.c.l.b16 %v283
    %v933 = vunpack.c.h.b16 %v283
    %v934 = vunpack.c.l.b16 %v284
    %v935 = vunpack.c.l.b16 %v285
    %v936 = vunpack.c.h.b16 %v285
    %v937 = vunpack.c.l.b16 %v286
    %v938 = vunpack.c.l.b16 %v287
    %v939 = vunpack.c.h.b16 %v287
    %v940 = vunpack.c.l.b16 %v288
    %v941 = vunpack.c.l.b16 %v289
    %v942 = vunpack.c.h.b16 %v289
    %v943 = vunpack.c.l.b16 %v290
    %v944 = vunpack.c.l.b16 %v291
    %v945 = vunpack.c.h.b16 %v291
    %v946 = vunpack.c.l.b16 %v292
    %v947 = vunpack.c.l.b16 %v293
    %v948 = vunpack.c.h.b16 %v293
    %v949 = vunpack.c.l.b16 %v294
    %v950 = vunpack.c.l.b16 %v295
    %v951 = vunpack.c.h.b16 %v295
    %v952 = vunpack.c.l.b16 %v296
    %v953 = vunpack.c.l.b16 %v297
    %v954 = vunpack.c.h.b16 %v297
    %v955 = vunpack.c.l.b16 %v298
    %v956 = vunpack.c.l.b16 %v299
    %v957 = vunpack.c.h.b16 %v299
    %v958 = vunpack.c.l.b16 %v300
    %v959 = vunpack.c.l.b16 %v301
    %v960 = vunpack.c.h.b16 %v301
    %v961 = vunpack.c.l.b16 %v302
    %v962 = vunpack.c.l.b16 %v303
    %v963 = vunpack.c.h.b16 %v303
    %v964 = vunpack.c.l.b16 %v304
    %v965 = vunpack.c.l.b16 %v305
    %v966 = vunpack.c.h.b16 %v305
    %v967 = vunpack.c.l.b16 %v306
    %v968 = vunpack.c.l.b16 %v307
    %v969 = vunpack.c.h.b16 %v307
    %v970 = vunpack.c.l.b16 %v308
    %v971 = vunpack.c.l.b16 %v309
    %v972 = vunpack.c.h.b16 %v309
    %v973 = vunpack.c.l.b16 %v310
    %v974 = vunpack.c.l.b16 %v311
    %v975 = vunpack.c.h.b16 %v311
    %v976 = vunpack.c.l.b16 %v312
    %v977 = vunpack.c.l.b16 %v313
    %v978 = vunpack.c.h.b16 %v313
    %v979 = vunpack.c.l.b16 %v314
    %v980 = vunpack.c.l.b16 %v315
    %v981 = vunpack.c.h.b16 %v315
    %v982 = vunpack.c.l.b16 %v316
    %v983 = vpack.c.b16 %v602, %v599
    %v984 = vpack.c.b16 %v603, %v600
    %v985 = vpack.c.b16 %v604, %v601
    %v986 = vpack.c.b16 %v608, %v605
    %v987 = vpack.c.b16 %v609, %v606
    %v988 = vpack.c.b16 %v610, %v607
    %v989 = vpack.c.b16 %v614, %v611
    %v990 = vpack.c.b16 %v615, %v612
    %v991 = vpack.c.b16 %v616, %v613
    %v992 = vpack.c.b16 %v620, %v617
    %v993 = vpack.c.b16 %v621, %v618
    %v994 = vpack.c.b16 %v622, %v619
    %v995 = vpack.c.b16 %v626, %v623
    %v996 = vpack.c.b16 %v627, %v624
    %v997 = vpack.c.b16 %v628, %v625
    %v998 = vpack.c.b16 %v632, %v629
    %v999 = vpack.c.b16 %v633, %v630
    %v1000 = vpack.c.b16 %v634, %v631
    %v1001 = vpack.c.b16 %v638, %v635
    %v1002 = vpack.c.b16 %v639, %v636
    %v1003 = vpack.c.b16 %v640, %v637
    %v1004 = vpack.c.b16 %v644, %v641
    %v1005 = vpack.c.b16 %v645, %v642
    %v1006 = vpack.c.b16 %v646, %v643
    %v1007 = vpack.c.b16 %v650, %v647
    %v1008 = vpack.c.b16 %v651, %v648
    %v1009 = vpack.c.b16 %v652, %v649
    %v1010 = vpack.c.b16 %v656, %v653
    %v1011 = vpack.c.b16 %v657, %v654
    %v1012 = vpack.c.b16 %v658, %v655
    %v1013 = vpack.c.b16 %v662, %v659
    %v1014 = vpack.c.b16 %v663, %v660
    %v1015 = vpack.c.b16 %v664, %v661
    %v1016 = vpack.c.b16 %v668, %v665
    %v1017 = vpack.c.b16 %v669, %v666
    %v1018 = vpack.c.b16 %v670, %v667
    %v1019 = vpack.c.b16 %v674, %v671
    %v1020 = vpack.c.b16 %v675, %v672
    %v1021 = vpack.c.b16 %v676, %v673
    %v1022 = vpack.c.b16 %v680, %v677
    %v1023 = vpack.c.b16 %v681, %v678
    %v1024 = vpack.c.b16 %v682, %v679
    %v1025 = vpack.c.b16 %v686, %v683
    %v1026 = vpack.c.b16 %v687, %v684
    %v1027 = vpack.c.b16 %v688, %v685
    %v1028 = vpack.c.b16 %v692, %v689
    %v1029 = vpack.c.b16 %v693, %v690
    %v1030 = vpack.c.b16 %v694, %v691
    %v1031 = vpack.c.b16 %v698, %v695
    %v1032 = vpack.c.b16 %v699, %v696
    %v1033 = vpack.c.b16 %v700, %v697
    %v1034 = vpack.c.b16 %v704, %v701
    %v1035 = vpack.c.b16 %v705, %v702
    %v1036 = vpack.c.b16 %v706, %v703
    %v1037 = vpack.c.b16 %v710, %v707
    %v1038 = vpack.c.b16 %v711, %v708
    %v1039 = vpack.c.b16 %v712, %v709
    %v1040 = vpack.c.b16 %v716, %v713
    %v1041 = vpack.c.b16 %v717, %v714
    %v1042 = vpack.c.b16 %v718, %v715
    %v1043 = vpack.c.b16 %v722, %v719
    %v1044 = vpack.c.b16 %v723, %v720
    %v1045 = vpack.c.b16 %v724, %v721
    %v1046 = vpack.c.b16 %v728, %v725
    %v1047 = vpack.c.b16 %v729, %v726
    %v1048 = vpack.c.b16 %v730, %v727
    %v1049 = vpack.c.b16 %v734, %v731
    %v1050 = vpack.c.b16 %v735, %v732
    %v1051 = vpack.c.b16 %v736, %v733
    %v1052 = vpack.c.b16 %v740, %v737
    %v1053 = vpack.c.b16 %v741, %v738
    %v1054 = vpack.c.b16 %v742, %v739
    %v1055 = vpack.c.b16 %v746, %v743
    %v1056 = vpack.c.b16 %v747, %v744
    %v1057 = vpack.c.b16 %v748, %v745
    %v1058 = vpack.c.b16 %v752, %v749
    %v1059 = vpack.c.b16 %v753, %v750
    %v1060 = vpack.c.b16 %v754, %v751
    %v1061 = vpack.c.b16 %v758, %v755
    %v1062 = vpack.c.b16 %v759, %v756
    %v1063 = vpack.c.b16 %v760, %v757
    %v1064 = vpack.c.b16 %v764, %v761
    %v1065 = vpack.c.b16 %v765, %v762
    %v1066 = vpack.c.b16 %v766, %v763
    %v1067 = vpack.c.b16 %v770, %v767
    %v1068 = vpack.c.b16 %v771, %v768
    %v1069 = vpack.c.b16 %v772, %v769
    %v1070 = vpack.c.b16 %v776, %v773
    %v1071 = vpack.c.b16 %v777, %v774
    %v1072 = vpack.c.b16 %v778, %v775
    %v1073 = vpack.c.b16 %v782, %v779
    %v1074 = vpack.c.b16 %v783, %v780
    %v1075 = vpack.c.b16 %v784, %v781
    %v1076 = vpack.c.b16 %v788, %v785
    %v1077 = vpack.c.b16 %v789, %v786
    %v1078 = vpack.c.b16 %v790, %v787
    %v1079 = vpack.c.b16 %v794, %v791
    %v1080 = vpack.c.b16 %v795, %v792
    %v1081 = vpack.c.b16 %v796, %v793
    %v1082 = vpack.c.b16 %v800, %v797
    %v1083 = vpack.c.b16 %v801, %v798
    %v1084 = vpack.c.b16 %v802, %v799
    %v1085 = vpack.c.b16 %v806, %v803
    %v1086 = vpack.c.b16 %v807, %v804
    %v1087 = vpack.c.b16 %v808, %v805
    %v1088 = vpack.c.b16 %v812, %v809
    %v1089 = vpack.c.b16 %v813, %v810
    %v1090 = vpack.c.b16 %v814, %v811
    %v1091 = vpack.c.b16 %v818, %v815
    %v1092 = vpack.c.b16 %v819, %v816
    %v1093 = vpack.c.b16 %v820, %v817
    %v1094 = vpack.c.b16 %v824, %v821
    %v1095 = vpack.c.b16 %v825, %v822
    %v1096 = vpack.c.b16 %v826, %v823
    %v1097 = vpack.c.b16 %v830, %v827
    %v1098 = vpack.c.b16 %v831, %v828
    %v1099 = vpack.c.b16 %v832, %v829
    %v1100 = vpack.c.b16 %v836, %v833
    %v1101 = vpack.c.b16 %v837, %v834
    %v1102 = vpack.c.b16 %v838, %v835
    %v1103 = vpack.c.b16 %v842, %v839
    %v1104 = vpack.c.b16 %v843, %v840
    %v1105 = vpack.c.b16 %v844, %v841
    %v1106 = vpack.c.b16 %v848, %v845
    %v1107 = vpack.c.b16 %v849, %v846
    %v1108 = vpack.c.b16 %v850, %v847
    %v1109 = vpack.c.b16 %v854, %v851
    %v1110 = vpack.c.b16 %v855, %v852
    %v1111 = vpack.c.b16 %v856, %v853
    %v1112 = vpack.c.b16 %v860, %v857
    %v1113 = vpack.c.b16 %v861, %v858
    %v1114 = vpack.c.b16 %v862, %v859
    %v1115 = vpack.c.b16 %v866, %v863
    %v1116 = vpack.c.b16 %v867, %v864
    %v1117 = vpack.c.b16 %v868, %v865
    %v1118 = vpack.c.b16 %v872, %v869
    %v1119 = vpack.c.b16 %v873, %v870
    %v1120 = vpack.c.b16 %v874, %v871
    %v1121 = vpack.c.b16 %v878, %v875
    %v1122 = vpack.c.b16 %v879, %v876
    %v1123 = vpack.c.b16 %v880, %v877
    %v1124 = vpack.c.b16 %v884, %v881
    %v1125 = vpack.c.b16 %v885, %v882
    %v1126 = vpack.c.b16 %v886, %v883
    %v1127 = vpack.c.b16 %v890, %v887
    %v1128 = vpack.c.b16 %v891, %v888
    %v1129 = vpack.c.b16 %v892, %v889
    %v1130 = vpack.c.b16 %v896, %v893
    %v1131 = vpack.c.b16 %v897, %v894
    %v1132 = vpack.c.b16 %v898, %v895
    %v1133 = vpack.c.b16 %v902, %v899
    %v1134 = vpack.c.b16 %v903, %v900
    %v1135 = vpack.c.b16 %v904, %v901
    %v1136 = vpack.c.b16 %v908, %v905
    %v1137 = vpack.c.b16 %v909, %v906
    %v1138 = vpack.c.b16 %v910, %v907
    %v1139 = vpack.c.b16 %v914, %v911
    %v1140 = vpack.c.b16 %v915, %v912
    %v1141 = vpack.c.b16 %v916, %v913
    %v1142 = vpack.c.b16 %v920, %v917
    %v1143 = vpack.c.b16 %v921, %v918
    %v1144 = vpack.c.b16 %v922, %v919
    %v1145 = vpack.c.b16 %v926, %v923
    %v1146 = vpack.c.b16 %v927, %v924
    %v1147 = vpack.c.b16 %v928, %v925
    %v1148 = vpack.c.b16 %v932, %v929
    %v1149 = vpack.c.b16 %v933, %v930
    %v1150 = vpack.c.b16 %v934, %v931
    %v1151 = vpack.c.b16 %v938, %v935
    %v1152 = vpack.c.b16 %v939, %v936
    %v1153 = vpack.c.b16 %v940, %v937
    %v1154 = vpack.c.b16 %v944, %v941
    %v1155 = vpack.c.b16 %v945, %v942
    %v1156 = vpack.c.b16 %v946, %v943
    %v1157 = vpack.c.b16 %v950, %v947
    %v1158 = vpack.c.b16 %v951, %v948
    %v1159 = vpack.c.b16 %v952, %v949
    %v1160 = vpack.c.b16 %v956, %v953
    %v1161 = vpack.c.b16 %v957, %v954
    %v1162 = vpack.c.b16 %v958, %v955
    %v1163 = vpack.c.b16 %v962, %v959
    %v1164 = vpack.c.b16 %v963, %v960
    %v1165 = vpack.c.b16 %v964, %v961
    %v1166 = vpack.c.b16 %v968, %v965
    %v1167 = vpack.c.b16 %v969, %v966
    %v1168 = vpack.c.b16 %v970, %v967
    %v1169 = vpack.c.b16 %v974, %v971
    %v1170 = vpack.c.b16 %v975, %v972
    %v1171 = vpack.c.b16 %v976, %v973
    %v1172 = vpack.c.b16 %v980, %v977
    %v1173 = vpack.c.b16 %v981, %v978
    %v1174 = vpack.c.b16 %v982, %v979
    %1367 = vmatpush.bf16.msra.mxu0 %v1004
    %1368 = vmatpush.bf16.msra.mxu0 %v1001
    %1369 = vmatpush.bf16.msra.mxu0 %v998
    %1370 = vmatpush.bf16.msra.mxu0 %v995
    %1371 = vmatpush.bf16.msra.mxu0 %v992
    %1372 = vmatpush.bf16.msra.mxu0 %v989
    %1373 = vmatpush.bf16.msra.mxu0 %v986
    %1374 = vmatpush.bf16.msra.mxu0 %v983
    %1375 = vmatmul.bf16.gmra.mxu0 %v327
    %v1376 = vpop.f32.mrf.mxu0
    %v1377 = vadd.f32 %v319, %v1376
    %v1378 = vpop.f32.mrf.mxu0
    %1379 = vdwg.mxu0
    %1380 = vmatpush.bf16.msra.mxu0 %v1028
    %1381 = vmatpush.bf16.msra.mxu0 %v1025
    %1382 = vmatpush.bf16.msra.mxu0 %v1022
    %1383 = vmatpush.bf16.msra.mxu0 %v1019
    %1384 = vmatpush.bf16.msra.mxu0 %v1016
    %1385 = vmatpush.bf16.msra.mxu0 %v1013
    %1386 = vmatpush.bf16.msra.mxu0 %v1010
    %1387 = vmatpush.bf16.msra.mxu0 %v1007
    %1388 = vmatmul.bf16.gmra.mxu0 %v328
    %v1389 = vpop.f32.mrf.mxu0
    %v1390 = vadd.f32 %v1377, %v1389
    %v1391 = vpop.f32.mrf.mxu0
    %1392 = vdwg.mxu0
    %1393 = vmatpush.bf16.msra.mxu0 %v1052
    %1394 = vmatpush.bf16.msra.mxu0 %v1049
    %1395 = vmatpush.bf16.msra.mxu0 %v1046
    %1396 = vmatpush.bf16.msra.mxu0 %v1043
    %1397 = vmatpush.bf16.msra.mxu0 %v1040
    %1398 = vmatpush.bf16.msra.mxu0 %v1037
    %1399 = vmatpush.bf16.msra.mxu0 %v1034
    %1400 = vmatpush.bf16.msra.mxu0 %v1031
    %1401 = vmatmul.bf16.gmra.mxu0 %v329
    %v1402 = vpop.f32.mrf.mxu0
    %v1403 = vadd.f32 %v1390, %v1402
    %v1404 = vpop.f32.mrf.mxu0
    %1405 = vdwg.mxu0
    %1406 = vmatpush.bf16.msra.mxu0 %v1076
    %1407 = vmatpush.bf16.msra.mxu0 %v1073
    %1408 = vmatpush.bf16.msra.mxu0 %v1070
    %1409 = vmatpush.bf16.msra.mxu0 %v1067
    %1410 = vmatpush.bf16.msra.mxu0 %v1064
    %1411 = vmatpush.bf16.msra.mxu0 %v1061
    %1412 = vmatpush.bf16.msra.mxu0 %v1058
    %1413 = vmatpush.bf16.msra.mxu0 %v1055
    %1414 = vmatmul.bf16.gmra.mxu0 %v330
    %v1415 = vpop.f32.mrf.mxu0
    %v1416 = vadd.f32 %v1403, %v1415
    %v1417 = vpop.f32.mrf.mxu0
    %1418 = vdwg.mxu0
    %1419 = vmatpush.bf16.msra.mxu0 %v1100
    %1420 = vmatpush.bf16.msra.mxu0 %v1097
    %1421 = vmatpush.bf16.msra.mxu0 %v1094
    %1422 = vmatpush.bf16.msra.mxu0 %v1091
    %1423 = vmatpush.bf16.msra.mxu0 %v1088
    %1424 = vmatpush.bf16.msra.mxu0 %v1085
    %1425 = vmatpush.bf16.msra.mxu0 %v1082
    %1426 = vmatpush.bf16.msra.mxu0 %v1079
    %1427 = vmatmul.bf16.gmra.mxu0 %v331
    %v1428 = vpop.f32.mrf.mxu0
    %v1429 = vadd.f32 %v1416, %v1428
    %v1430 = vpop.f32.mrf.mxu0
    %1431 = vdwg.mxu0
    %1432 = vmatpush.bf16.msra.mxu0 %v1124
    %1433 = vmatpush.bf16.msra.mxu0 %v1121
    %1434 = vmatpush.bf16.msra.mxu0 %v1118
    %1435 = vmatpush.bf16.msra.mxu0 %v1115
    %1436 = vmatpush.bf16.msra.mxu0 %v1112
    %1437 = vmatpush.bf16.msra.mxu0 %v1109
    %1438 = vmatpush.bf16.msra.mxu0 %v1106
    %1439 = vmatpush.bf16.msra.mxu0 %v1103
    %1440 = vmatmul.bf16.gmra.mxu0 %v332
    %v1441 = vpop.f32.mrf.mxu0
    %v1442 = vadd.f32 %v1429, %v1441
    %v1443 = vpop.f32.mrf.mxu0
    %1444 = vdwg.mxu0
    %1445 = vmatpush.bf16.msra.mxu0 %v1148
    %1446 = vmatpush.bf16.msra.mxu0 %v1145
    %1447 = vmatpush.bf16.msra.mxu0 %v1142
    %1448 = vmatpush.bf16.msra.mxu0 %v1139
    %1449 = vmatpush.bf16.msra.mxu0 %v1136
    %1450 = vmatpush.bf16.msra.mxu0 %v1133
    %1451 = vmatpush.bf16.msra.mxu0 %v1130
    %1452 = vmatpush.bf16.msra.mxu0 %v1127
    %1453 = vmatmul.bf16.gmra.mxu0 %v333
    %v1454 = vpop.f32.mrf.mxu0
    %v1455 = vadd.f32 %v1442, %v1454
    %v1456 = vpop.f32.mrf.mxu0
    %1457 = vdwg.mxu0
    %1458 = vmatpush.bf16.msra.mxu0 %v1172
    %1459 = vmatpush.bf16.msra.mxu0 %v1169
    %1460 = vmatpush.bf16.msra.mxu0 %v1166
    %1461 = vmatpush.bf16.msra.mxu0 %v1163
    %1462 = vmatpush.bf16.msra.mxu0 %v1160
    %1463 = vmatpush.bf16.msra.mxu0 %v1157
    %1464 = vmatpush.bf16.msra.mxu0 %v1154
    %1465 = vmatpush.bf16.msra.mxu0 %v1151
    %1466 = vmatmul.bf16.gmra.mxu0 %v334
    %v1467 = vpop.f32.mrf.mxu0
    %v1468 = vadd.f32 %v1455, %v1467
    %v1469 = vpop.f32.mrf.mxu0
    %1470 = vdwg.mxu0
    %1471 = vmatpush.bf16.msra.mxu0 %v1005
    %1472 = vmatpush.bf16.msra.mxu0 %v1002
    %1473 = vmatpush.bf16.msra.mxu0 %v999
    %1474 = vmatpush.bf16.msra.mxu0 %v996
    %1475 = vmatpush.bf16.msra.mxu0 %v993
    %1476 = vmatpush.bf16.msra.mxu0 %v990
    %1477 = vmatpush.bf16.msra.mxu0 %v987
    %1478 = vmatpush.bf16.msra.mxu0 %v984
    %1479 = vmatmul.bf16.gmra.mxu0 %v327
    %v1480 = vpop.f32.mrf.mxu0
    %v1481 = vadd.f32 %v320, %v1480
    %v1482 = vpop.f32.mrf.mxu0
    %1483 = vdwg.mxu0
    %1484 = vmatpush.bf16.msra.mxu0 %v1029
    %1485 = vmatpush.bf16.msra.mxu0 %v1026
    %1486 = vmatpush.bf16.msra.mxu0 %v1023
    %1487 = vmatpush.bf16.msra.mxu0 %v1020
    %1488 = vmatpush.bf16.msra.mxu0 %v1017
    %1489 = vmatpush.bf16.msra.mxu0 %v1014
    %1490 = vmatpush.bf16.msra.mxu0 %v1011
    %1491 = vmatpush.bf16.msra.mxu0 %v1008
    %1492 = vmatmul.bf16.gmra.mxu0 %v328
    %v1493 = vpop.f32.mrf.mxu0
    %v1494 = vadd.f32 %v1481, %v1493
    %v1495 = vpop.f32.mrf.mxu0
    %1496 = vdwg.mxu0
    %1497 = vmatpush.bf16.msra.mxu0 %v1053
    %1498 = vmatpush.bf16.msra.mxu0 %v1050
    %1499 = vmatpush.bf16.msra.mxu0 %v1047
    %1500 = vmatpush.bf16.msra.mxu0 %v1044
    %1501 = vmatpush.bf16.msra.mxu0 %v1041
    %1502 = vmatpush.bf16.msra.mxu0 %v1038
    %1503 = vmatpush.bf16.msra.mxu0 %v1035
    %1504 = vmatpush.bf16.msra.mxu0 %v1032
    %1505 = vmatmul.bf16.gmra.mxu0 %v329
    %v1506 = vpop.f32.mrf.mxu0
    %v1507 = vadd.f32 %v1494, %v1506
    %v1508 = vpop.f32.mrf.mxu0
    %1509 = vdwg.mxu0
    %1510 = vmatpush.bf16.msra.mxu0 %v1077
    %1511 = vmatpush.bf16.msra.mxu0 %v1074
    %1512 = vmatpush.bf16.msra.mxu0 %v1071
    %1513 = vmatpush.bf16.msra.mxu0 %v1068
    %1514 = vmatpush.bf16.msra.mxu0 %v1065
    %1515 = vmatpush.bf16.msra.mxu0 %v1062
    %1516 = vmatpush.bf16.msra.mxu0 %v1059
    %1517 = vmatpush.bf16.msra.mxu0 %v1056
    %1518 = vmatmul.bf16.gmra.mxu0 %v330
    %v1519 = vpop.f32.mrf.mxu0
    %v1520 = vadd.f32 %v1507, %v1519
    %v1521 = vpop.f32.mrf.mxu0
    %1522 = vdwg.mxu0
    %1523 = vmatpush.bf16.msra.mxu0 %v1101
    %1524 = vmatpush.bf16.msra.mxu0 %v1098
    %1525 = vmatpush.bf16.msra.mxu0 %v1095
    %1526 = vmatpush.bf16.msra.mxu0 %v1092
    %1527 = vmatpush.bf16.msra.mxu0 %v1089
    %1528 = vmatpush.bf16.msra.mxu0 %v1086
    %1529 = vmatpush.bf16.msra.mxu0 %v1083
    %1530 = vmatpush.bf16.msra.mxu0 %v1080
    %1531 = vmatmul.bf16.gmra.mxu0 %v331
    %v1532 = vpop.f32.mrf.mxu0
    %v1533 = vadd.f32 %v1520, %v1532
    %v1534 = vpop.f32.mrf.mxu0
    %1535 = vdwg.mxu0
    %1536 = vmatpush.bf16.msra.mxu0 %v1125
    %1537 = vmatpush.bf16.msra.mxu0 %v1122
    %1538 = vmatpush.bf16.msra.mxu0 %v1119
    %1539 = vmatpush.bf16.msra.mxu0 %v1116
    %1540 = vmatpush.bf16.msra.mxu0 %v1113
    %1541 = vmatpush.bf16.msra.mxu0 %v1110
    %1542 = vmatpush.bf16.msra.mxu0 %v1107
    %1543 = vmatpush.bf16.msra.mxu0 %v1104
    %1544 = vmatmul.bf16.gmra.mxu0 %v332
    %v1545 = vpop.f32.mrf.mxu0
    %v1546 = vadd.f32 %v1533, %v1545
    %v1547 = vpop.f32.mrf.mxu0
    %1548 = vdwg.mxu0
    %1549 = vmatpush.bf16.msra.mxu0 %v1149
    %1550 = vmatpush.bf16.msra.mxu0 %v1146
    %1551 = vmatpush.bf16.msra.mxu0 %v1143
    %1552 = vmatpush.bf16.msra.mxu0 %v1140
    %1553 = vmatpush.bf16.msra.mxu0 %v1137
    %1554 = vmatpush.bf16.msra.mxu0 %v1134
    %1555 = vmatpush.bf16.msra.mxu0 %v1131
    %1556 = vmatpush.bf16.msra.mxu0 %v1128
    %1557 = vmatmul.bf16.gmra.mxu0 %v333
    %v1558 = vpop.f32.mrf.mxu0
    %v1559 = vadd.f32 %v1546, %v1558
    %v1560 = vpop.f32.mrf.mxu0
    %1561 = vdwg.mxu0
    %1562 = vmatpush.bf16.msra.mxu0 %v1173
    %1563 = vmatpush.bf16.msra.mxu0 %v1170
    %1564 = vmatpush.bf16.msra.mxu0 %v1167
    %1565 = vmatpush.bf16.msra.mxu0 %v1164
    %1566 = vmatpush.bf16.msra.mxu0 %v1161
    %1567 = vmatpush.bf16.msra.mxu0 %v1158
    %1568 = vmatpush.bf16.msra.mxu0 %v1155
    %1569 = vmatpush.bf16.msra.mxu0 %v1152
    %1570 = vmatmul.bf16.gmra.mxu0 %v334
    %v1571 = vpop.f32.mrf.mxu0
    %v1572 = vadd.f32 %v1559, %v1571
    %v1573 = vpop.f32.mrf.mxu0
    %1574 = vdwg.mxu0
    %1575 = vmatpush.bf16.msra.mxu0 %v1006
    %1576 = vmatpush.bf16.msra.mxu0 %v1003
    %1577 = vmatpush.bf16.msra.mxu0 %v1000
    %1578 = vmatpush.bf16.msra.mxu0 %v997
    %1579 = vmatpush.bf16.msra.mxu0 %v994
    %1580 = vmatpush.bf16.msra.mxu0 %v991
    %1581 = vmatpush.bf16.msra.mxu0 %v988
    %1582 = vmatpush.bf16.msra.mxu0 %v985
    %1583 = vmatmul.bf16.gmra.mxu0 %v327
    %v1584 = vpop.f32.mrf.mxu0
    %v1585 = vadd.f32 %v321, %v1584
    %v1586 = vpop.f32.mrf.mxu0
    %1587 = vdwg.mxu0
    %1588 = vmatpush.bf16.msra.mxu0 %v1030
    %1589 = vmatpush.bf16.msra.mxu0 %v1027
    %1590 = vmatpush.bf16.msra.mxu0 %v1024
    %1591 = vmatpush.bf16.msra.mxu0 %v1021
    %1592 = vmatpush.bf16.msra.mxu0 %v1018
    %1593 = vmatpush.bf16.msra.mxu0 %v1015
    %1594 = vmatpush.bf16.msra.mxu0 %v1012
    %1595 = vmatpush.bf16.msra.mxu0 %v1009
    %1596 = vmatmul.bf16.gmra.mxu0 %v328
    %v1597 = vpop.f32.mrf.mxu0
    %v1598 = vadd.f32 %v1585, %v1597
    %v1599 = vpop.f32.mrf.mxu0
    %1600 = vdwg.mxu0
    %1601 = vmatpush.bf16.msra.mxu0 %v1054
    %1602 = vmatpush.bf16.msra.mxu0 %v1051
    %1603 = vmatpush.bf16.msra.mxu0 %v1048
    %1604 = vmatpush.bf16.msra.mxu0 %v1045
    %1605 = vmatpush.bf16.msra.mxu0 %v1042
    %1606 = vmatpush.bf16.msra.mxu0 %v1039
    %1607 = vmatpush.bf16.msra.mxu0 %v1036
    %1608 = vmatpush.bf16.msra.mxu0 %v1033
    %1609 = vmatmul.bf16.gmra.mxu0 %v329
    %v1610 = vpop.f32.mrf.mxu0
    %v1611 = vadd.f32 %v1598, %v1610
    %v1612 = vpop.f32.mrf.mxu0
    %1613 = vdwg.mxu0
    %1614 = vmatpush.bf16.msra.mxu0 %v1078
    %1615 = vmatpush.bf16.msra.mxu0 %v1075
    %1616 = vmatpush.bf16.msra.mxu0 %v1072
    %1617 = vmatpush.bf16.msra.mxu0 %v1069
    %1618 = vmatpush.bf16.msra.mxu0 %v1066
    %1619 = vmatpush.bf16.msra.mxu0 %v1063
    %1620 = vmatpush.bf16.msra.mxu0 %v1060
    %1621 = vmatpush.bf16.msra.mxu0 %v1057
    %1622 = vmatmul.bf16.gmra.mxu0 %v330
    %v1623 = vpop.f32.mrf.mxu0
    %v1624 = vadd.f32 %v1611, %v1623
    %v1625 = vpop.f32.mrf.mxu0
    %1626 = vdwg.mxu0
    %1627 = vmatpush.bf16.msra.mxu0 %v1102
    %1628 = vmatpush.bf16.msra.mxu0 %v1099
    %1629 = vmatpush.bf16.msra.mxu0 %v1096
    %1630 = vmatpush.bf16.msra.mxu0 %v1093
    %1631 = vmatpush.bf16.msra.mxu0 %v1090
    %1632 = vmatpush.bf16.msra.mxu0 %v1087
    %1633 = vmatpush.bf16.msra.mxu0 %v1084
    %1634 = vmatpush.bf16.msra.mxu0 %v1081
    %1635 = vmatmul.bf16.gmra.mxu0 %v331
    %v1636 = vpop.f32.mrf.mxu0
    %v1637 = vadd.f32 %v1624, %v1636
    %v1638 = vpop.f32.mrf.mxu0
    %1639 = vdwg.mxu0
    %1640 = vmatpush.bf16.msra.mxu0 %v1126
    %1641 = vmatpush.bf16.msra.mxu0 %v1123
    %1642 = vmatpush.bf16.msra.mxu0 %v1120
    %1643 = vmatpush.bf16.msra.mxu0 %v1117
    %1644 = vmatpush.bf16.msra.mxu0 %v1114
    %1645 = vmatpush.bf16.msra.mxu0 %v1111
    %1646 = vmatpush.bf16.msra.mxu0 %v1108
    %1647 = vmatpush.bf16.msra.mxu0 %v1105
    %1648 = vmatmul.bf16.gmra.mxu0 %v332
    %v1649 = vpop.f32.mrf.mxu0
    %v1650 = vadd.f32 %v1637, %v1649
    %v1651 = vpop.f32.mrf.mxu0
    %1652 = vdwg.mxu0
    %1653 = vmatpush.bf16.msra.mxu0 %v1150
    %1654 = vmatpush.bf16.msra.mxu0 %v1147
    %1655 = vmatpush.bf16.msra.mxu0 %v1144
    %1656 = vmatpush.bf16.msra.mxu0 %v1141
    %1657 = vmatpush.bf16.msra.mxu0 %v1138
    %1658 = vmatpush.bf16.msra.mxu0 %v1135
    %1659 = vmatpush.bf16.msra.mxu0 %v1132
    %1660 = vmatpush.bf16.msra.mxu0 %v1129
    %1661 = vmatmul.bf16.gmra.mxu0 %v333
    %v1662 = vpop.f32.mrf.mxu0
    %v1663 = vadd.f32 %v1650, %v1662
    %v1664 = vpop.f32.mrf.mxu0
    %1665 = vdwg.mxu0
    %1666 = vmatpush.bf16.msra.mxu0 %v1174
    %1667 = vmatpush.bf16.msra.mxu0 %v1171
    %1668 = vmatpush.bf16.msra.mxu0 %v1168
    %1669 = vmatpush.bf16.msra.mxu0 %v1165
    %1670 = vmatpush.bf16.msra.mxu0 %v1162
    %1671 = vmatpush.bf16.msra.mxu0 %v1159
    %1672 = vmatpush.bf16.msra.mxu0 %v1156
    %1673 = vmatpush.bf16.msra.mxu0 %v1153
    %1674 = vmatmul.bf16.gmra.mxu0 %v334
    %v1675 = vpop.f32.mrf.mxu0
    %v1676 = vadd.f32 %v1663, %v1675
    %v1677 = vpop.f32.mrf.mxu0
    %1678 = vdwg.mxu0
    %v1679 = vpack.c.bf16 %v59, %v59
    %v1680 = vld [vmem:[%s2] sm:$0xff]
    %v1681 = vld [vmem:[%s2 + $0x8] sm:$0xf]
    %v1682 = vld [vmem:[%s2 + $0xc] sm:$0xff]
    %v1683 = vld [vmem:[%s2 + $0x14] sm:$0xf]
    %v1684 = vld [vmem:[%s2 + $0x18] sm:$0xff]
    %v1685 = vld [vmem:[%s2 + $0x20] sm:$0xf]
    %v1686 = vld [vmem:[%s2 + $0x24] sm:$0xff]
    %v1687 = vld [vmem:[%s2 + $0x2c] sm:$0xf]
    %v1688 = vld [vmem:[%s2 + $0x30] sm:$0xff]
    %v1689 = vld [vmem:[%s2 + $0x38] sm:$0xf]
    %v1690 = vld [vmem:[%s2 + $0x3c] sm:$0xff]
    %v1691 = vld [vmem:[%s2 + $0x44] sm:$0xf]
    %v1692 = vld [vmem:[%s2 + $0x48] sm:$0xff]
    %v1693 = vld [vmem:[%s2 + $0x50] sm:$0xf]
    %v1694 = vld [vmem:[%s2 + $0x54] sm:$0xff]
    %v1695 = vld [vmem:[%s2 + $0x5c] sm:$0xf]
    %v1696 = vld [vmem:[%s2 + $0x60] sm:$0xff]
    %v1697 = vld [vmem:[%s2 + $0x68] sm:$0xf]
    %v1698 = vld [vmem:[%s2 + $0x6c] sm:$0xff]
    %v1699 = vld [vmem:[%s2 + $0x74] sm:$0xf]
    %v1700 = vld [vmem:[%s2 + $0x78] sm:$0xff]
    %v1701 = vld [vmem:[%s2 + $0x80] sm:$0xf]
    %v1702 = vld [vmem:[%s2 + $0x84] sm:$0xff]
    %v1703 = vld [vmem:[%s2 + $0x8c] sm:$0xf]
    %v1704 = vld [vmem:[%s2 + $0x90] sm:$0xff]
    %v1705 = vld [vmem:[%s2 + $0x98] sm:$0xf]
    %v1706 = vld [vmem:[%s2 + $0x9c] sm:$0xff]
    %v1707 = vld [vmem:[%s2 + $0xa4] sm:$0xf]
    %v1708 = vld [vmem:[%s2 + $0xa8] sm:$0xff]
    %v1709 = vld [vmem:[%s2 + $0xb0] sm:$0xf]
    %v1710 = vld [vmem:[%s2 + $0xb4] sm:$0xff]
    %v1711 = vld [vmem:[%s2 + $0xbc] sm:$0xf]
    %v1712 = vld [vmem:[%s4] sm:$0x7]
    %v1714 = vperm.slane %v1712, 0
    %v1715 = vperm.slane %v1712, 1
    %v1716 = vperm.slane %v1712, 2
    %v1752 = vunpack.c.l.b16 %v1680
    %v1753 = vunpack.c.h.b16 %v1680
    %v1754 = vunpack.c.l.b16 %v1681
    %v1755 = vunpack.c.l.b16 %v1682
    %v1756 = vunpack.c.h.b16 %v1682
    %v1757 = vunpack.c.l.b16 %v1683
    %v1758 = vunpack.c.l.b16 %v1684
    %v1759 = vunpack.c.h.b16 %v1684
    %v1760 = vunpack.c.l.b16 %v1685
    %v1761 = vunpack.c.l.b16 %v1686
    %v1762 = vunpack.c.h.b16 %v1686
    %v1763 = vunpack.c.l.b16 %v1687
    %v1764 = vunpack.c.l.b16 %v1688
    %v1765 = vunpack.c.h.b16 %v1688
    %v1766 = vunpack.c.l.b16 %v1689
    %v1767 = vunpack.c.l.b16 %v1690
    %v1768 = vunpack.c.h.b16 %v1690
    %v1769 = vunpack.c.l.b16 %v1691
    %v1770 = vunpack.c.l.b16 %v1692
    %v1771 = vunpack.c.h.b16 %v1692
    %v1772 = vunpack.c.l.b16 %v1693
    %v1773 = vunpack.c.l.b16 %v1694
    %v1774 = vunpack.c.h.b16 %v1694
    %v1775 = vunpack.c.l.b16 %v1695
    %v1776 = vunpack.c.l.b16 %v1696
    %v1777 = vunpack.c.h.b16 %v1696
    %v1778 = vunpack.c.l.b16 %v1697
    %v1779 = vunpack.c.l.b16 %v1698
    %v1780 = vunpack.c.h.b16 %v1698
    %v1781 = vunpack.c.l.b16 %v1699
    %v1782 = vunpack.c.l.b16 %v1700
    %v1783 = vunpack.c.h.b16 %v1700
    %v1784 = vunpack.c.l.b16 %v1701
    %v1785 = vunpack.c.l.b16 %v1702
    %v1786 = vunpack.c.h.b16 %v1702
    %v1787 = vunpack.c.l.b16 %v1703
    %v1788 = vunpack.c.l.b16 %v1704
    %v1789 = vunpack.c.h.b16 %v1704
    %v1790 = vunpack.c.l.b16 %v1705
    %v1791 = vunpack.c.l.b16 %v1706
    %v1792 = vunpack.c.h.b16 %v1706
    %v1793 = vunpack.c.l.b16 %v1707
    %v1794 = vunpack.c.l.b16 %v1708
    %v1795 = vunpack.c.h.b16 %v1708
    %v1796 = vunpack.c.l.b16 %v1709
    %v1797 = vunpack.c.l.b16 %v1710
    %v1798 = vunpack.c.h.b16 %v1710
    %v1799 = vunpack.c.l.b16 %v1711
    %v1800 = vpack.c.b16 %v1755, %v1752
    %v1801 = vpack.c.b16 %v1756, %v1753
    %v1802 = vpack.c.b16 %v1757, %v1754
    %v1803 = vpack.c.b16 %v1761, %v1758
    %v1804 = vpack.c.b16 %v1762, %v1759
    %v1805 = vpack.c.b16 %v1763, %v1760
    %v1806 = vpack.c.b16 %v1767, %v1764
    %v1807 = vpack.c.b16 %v1768, %v1765
    %v1808 = vpack.c.b16 %v1769, %v1766
    %v1809 = vpack.c.b16 %v1773, %v1770
    %v1810 = vpack.c.b16 %v1774, %v1771
    %v1811 = vpack.c.b16 %v1775, %v1772
    %v1812 = vpack.c.b16 %v1779, %v1776
    %v1813 = vpack.c.b16 %v1780, %v1777
    %v1814 = vpack.c.b16 %v1781, %v1778
    %v1815 = vpack.c.b16 %v1785, %v1782
    %v1816 = vpack.c.b16 %v1786, %v1783
    %v1817 = vpack.c.b16 %v1787, %v1784
    %v1818 = vpack.c.b16 %v1791, %v1788
    %v1819 = vpack.c.b16 %v1792, %v1789
    %v1820 = vpack.c.b16 %v1793, %v1790
    %v1821 = vpack.c.b16 %v1797, %v1794
    %v1822 = vpack.c.b16 %v1798, %v1795
    %v1823 = vpack.c.b16 %v1799, %v1796
    %1848 = vmatpush.bf16.msra.mxu0 %v1821
    %1849 = vmatpush.bf16.msra.mxu0 %v1818
    %1850 = vmatpush.bf16.msra.mxu0 %v1815
    %1851 = vmatpush.bf16.msra.mxu0 %v1812
    %1852 = vmatpush.bf16.msra.mxu0 %v1809
    %1853 = vmatpush.bf16.msra.mxu0 %v1806
    %1854 = vmatpush.bf16.msra.mxu0 %v1803
    %1855 = vmatpush.bf16.msra.mxu0 %v1800
    %1856 = vmatmul.bf16.gmra.mxu0 %v1679
    %v1857 = vpop.f32.mrf.mxu0
    %v1858 = vadd.f32 %v1714, %v1857
    %v1859 = vpop.f32.mrf.mxu0
    %1860 = vdwg.mxu0
    %1861 = vmatpush.bf16.msra.mxu0 %v1822
    %1862 = vmatpush.bf16.msra.mxu0 %v1819
    %1863 = vmatpush.bf16.msra.mxu0 %v1816
    %1864 = vmatpush.bf16.msra.mxu0 %v1813
    %1865 = vmatpush.bf16.msra.mxu0 %v1810
    %1866 = vmatpush.bf16.msra.mxu0 %v1807
    %1867 = vmatpush.bf16.msra.mxu0 %v1804
    %1868 = vmatpush.bf16.msra.mxu0 %v1801
    %1869 = vmatmul.bf16.gmra.mxu0 %v1679
    %v1870 = vpop.f32.mrf.mxu0
    %v1871 = vadd.f32 %v1715, %v1870
    %v1872 = vpop.f32.mrf.mxu0
    %1873 = vdwg.mxu0
    %1874 = vmatpush.bf16.msra.mxu0 %v1823
    %1875 = vmatpush.bf16.msra.mxu0 %v1820
    %1876 = vmatpush.bf16.msra.mxu0 %v1817
    %1877 = vmatpush.bf16.msra.mxu0 %v1814
    %1878 = vmatpush.bf16.msra.mxu0 %v1811
    %1879 = vmatpush.bf16.msra.mxu0 %v1808
    %1880 = vmatpush.bf16.msra.mxu0 %v1805
    %1881 = vmatpush.bf16.msra.mxu0 %v1802
    %1882 = vmatmul.bf16.gmra.mxu0 %v1679
    %v1883 = vpop.f32.mrf.mxu0
    %v1884 = vadd.f32 %v1716, %v1883
    %v1885 = vpop.f32.mrf.mxu0
    %1886 = vdwg.mxu0
    %v1887 = vadd.f32 %v1468, %v1858
    %v1888 = vxor.u32 %v1887, 2147483648
    %v1889 = vmul.f32 %v1888, 1.442695
    %v1890 = vpow.pop %v1889
    %v1891 = vadd.f32 %v1890, 1.0
    %v1892 = vrcp.pop %v1891
    %v1893 = vmul.f32 %v1891, %v1892
    %v1894 = vsub.f32 1.0, %v1893
    %v1895 = vmul.f32 %v1892, %v1894
    %v1896 = vadd.f32 %v1892, %v1895
    %vm1897 = vweird.f32 %v1891
    %vm1898 = vweird.f32 %v1892
    %vm1899 = vmor %vm1897, %vm1898
    %v1900 = vsel %vm1899, %v1892, %v1896
    %v1901 = vand.u32 2147483647, %v1891
    %vm1902 = vcmp.eq.f32.partialorder %v1901, 8.507059e+37
    %v1903 = vand.u32 %v1891, 2147483648
    %v1904 = vor.u32 1.1754944e-38, %v1903
    %v1905 = vsel %vm1902, %v1904, %v1900
    %v1906 = vmul.f32 1.0, %v1905
    %v1907 = vadd.f32 %v1572, %v1871
    %v1908 = vxor.u32 %v1907, 2147483648
    %v1909 = vmul.f32 %v1908, 1.442695
    %v1910 = vpow.pop %v1909
    %v1911 = vadd.f32 %v1910, 1.0
    %v1912 = vrcp.pop %v1911
    %v1913 = vmul.f32 %v1911, %v1912
    %v1914 = vsub.f32 1.0, %v1913
    %v1915 = vmul.f32 %v1912, %v1914
    %v1916 = vadd.f32 %v1912, %v1915
    %vm1917 = vweird.f32 %v1911
    %vm1918 = vweird.f32 %v1912
    %vm1919 = vmor %vm1917, %vm1918
    %v1920 = vsel %vm1919, %v1912, %v1916
    %v1921 = vand.u32 2147483647, %v1911
    %vm1922 = vcmp.eq.f32.partialorder %v1921, 8.507059e+37
    %v1923 = vand.u32 %v1911, 2147483648
    %v1924 = vor.u32 1.1754944e-38, %v1923
    %v1925 = vsel %vm1922, %v1924, %v1920
    %v1926 = vmul.f32 1.0, %v1925
    %v1927 = vmul.f32 %v1906, %v1884
    %v1928 = vadd.f32 %v1676, %v1927
    %v1929 = vtanh.pop %v1928
    %v1930 = vsub.f32 1.0, %v1926
    %v1931 = vmul.f32 %v1930, %v1929
    %v1932 = vmul.f32 %v1926, %v59
    %v1933 = vadd.f32 %v1931, %v1932
    %1934 = vst [vmem:[#allocation2] sm:$0x3] %v1933
    %1935 = vst [vmem:[#allocation7] sm:$0x3] %v1933
    %v1936 = vpack.c.bf16 %v1933, %v1933
    %v1937 = vld [vmem:[%s5] sm:$0xf]
    %v1938 = vld [vmem:[%s5 + $0x4] sm:$0xf]
    %v1939 = vld [vmem:[%s5 + $0x8] sm:$0xf]
    %v1940 = vld [vmem:[%s5 + $0xc] sm:$0xf]
    %v1941 = vld [vmem:[%s5 + $0x10] sm:$0xf]
    %v1942 = vld [vmem:[%s5 + $0x14] sm:$0xf]
    %v1943 = vld [vmem:[%s5 + $0x18] sm:$0xf]
    %v1944 = vld [vmem:[%s5 + $0x1c] sm:$0xf]
    %v1945 = vld [vmem:[%s5 + $0x20] sm:$0xf]
    %v1946 = vld [vmem:[%s5 + $0x24] sm:$0xf]
    %v1947 = vld [vmem:[%s5 + $0x28] sm:$0xf]
    %v1948 = vld [vmem:[%s5 + $0x2c] sm:$0xf]
    %v1949 = vld [vmem:[%s5 + $0x30] sm:$0xf]
    %v1950 = vld [vmem:[%s5 + $0x34] sm:$0xf]
    %v1951 = vld [vmem:[%s5 + $0x38] sm:$0xf]
    %v1952 = vld [vmem:[%s5 + $0x3c] sm:$0xf]
    %v1953 = vld [vmem:[%s6] sm:$0x1]
    %v1955 = vperm.slane %v1953, 0
    %v1973 = vunpack.c.l.b16 %v1937
    %v1974 = vunpack.c.l.b16 %v1938
    %v1975 = vunpack.c.l.b16 %v1939
    %v1976 = vunpack.c.l.b16 %v1940
    %v1977 = vunpack.c.l.b16 %v1941
    %v1978 = vunpack.c.l.b16 %v1942
    %v1979 = vunpack.c.l.b16 %v1943
    %v1980 = vunpack.c.l.b16 %v1944
    %v1981 = vunpack.c.l.b16 %v1945
    %v1982 = vunpack.c.l.b16 %v1946
    %v1983 = vunpack.c.l.b16 %v1947
    %v1984 = vunpack.c.l.b16 %v1948
    %v1985 = vunpack.c.l.b16 %v1949
    %v1986 = vunpack.c.l.b16 %v1950
    %v1987 = vunpack.c.l.b16 %v1951
    %v1988 = vunpack.c.l.b16 %v1952
    %v1989 = vpack.c.b16 %v1974, %v1973
    %v1990 = vpack.c.b16 %v1976, %v1975
    %v1991 = vpack.c.b16 %v1978, %v1977
    %v1992 = vpack.c.b16 %v1980, %v1979
    %v1993 = vpack.c.b16 %v1982, %v1981
    %v1994 = vpack.c.b16 %v1984, %v1983
    %v1995 = vpack.c.b16 %v1986, %v1985
    %v1996 = vpack.c.b16 %v1988, %v1987
    %2005 = vmatpush.bf16.msra.mxu0 %v1996
    %2006 = vmatpush.bf16.msra.mxu0 %v1995
    %2007 = vmatpush.bf16.msra.mxu0 %v1994
    %2008 = vmatpush.bf16.msra.mxu0 %v1993
    %2009 = vmatpush.bf16.msra.mxu0 %v1992
    %2010 = vmatpush.bf16.msra.mxu0 %v1991
    %2011 = vmatpush.bf16.msra.mxu0 %v1990
    %2012 = vmatpush.bf16.msra.mxu0 %v1989
    %2013 = vmatmul.bf16.gmra.mxu0 %v1936
    %v2014 = vpop.f32.mrf.mxu0
    %v2015 = vadd.f32 %v1955, %v2014
    %v2016 = vpop.f32.mrf.mxu0
    %2017 = vdwg.mxu0
    %v2018 = vlaneseq
    %v2019 = vand.u32 %v2018, 127
    %vm2020 = vcmp.lt.s32.totalorder %v2019, 6
    %v2021 = vsel %vm2020, %v2015, -1e+30
    %vm2022 = vcmask 1041408
    %v2023 = vsel %vm2022, %v2021, -inf
    %2024 = vmax.xlane.f32.xlu0 %v2023
    %v2025 = vpop.xlane.xlu0 %2024
    %v2026 = vsub.f32 %v2021, %v2025
    %v2027 = vmul.f32 %v2026, 1.442695
    %v2028 = vpow.pop %v2027
    %v2029 = vsel %vm2022, %v2028, 0.0
    %2030 = vadd.xlane.f32.xlu0 %v2029
    %v2031 = vpop.xlane.xlu0 %2030
    %v2032 = vlog2.pop %v2031
    %v2033 = vmul.f32 %v2032, 0.6931472
    %v2034 = vsub.f32 %v2026, %v2033
    %v2035 = vmul.f32 %v2034, 1.442695
    %v2036 = vpow.pop %v2035
    %2037 = vst [vmem:[#allocation6] sm:$0x3] %v2036
    %v2038 = vmul.f32 %v2034, %v2036
    %v2039 = vsel %vm2020, %v2038, 0.0
    %v2040 = vsel %vm2022, %v2039, 0.0
    %2041 = vadd.xlane.f32.xlu0 %v2040
    %v2042 = vpop.xlane.xlu0 %2041
    %v2043 = vsub.f32 0.0, %v2042
    %v2044 = vld [vmem:[%s8] sm:$0x3]
    %v2045 = vadd.f32 %v2021, %v2044
    %v2046 = vsel %vm2022, %v2045, -inf
    %2047 = vmax.xlane.f32.xlu0 %v2046
    %v2048 = vpop.xlane.xlu0 %2047
    %vm2049 = vcmp.eq.f32.partialorder %v2045, %v2048
    %v2050 = vsel %vm2049, %v2019, 128
    %v2051 = vsel %vm2022, %v2050, 2147483647
    %v2052 = vand.u32 %v2051, 65535
    %v2053 = vshra.s32 %v2051, 16
    %v2054 = vcvt.s32.f32 %v2052
    %v2055 = vcvt.s32.f32 %v2053
    %2056 = vmin.xlane.f32.xlu0 %v2055
    %v2057 = vpop.xlane.xlu0 %2056
    %vm2058 = vcmp.eq.f32.partialorder %v2055, %v2057
    %v2059 = vsel %vm2058, %v2054, inf
    %2060 = vmin.xlane.f32.xlu0 %v2059
    %v2061 = vpop.xlane.xlu0 %2060
    %v2062 = vcvt.f32.s32 %v2061
    %v2063 = vcvt.f32.s32 %v2057
    %v2064 = vshll.u32 %v2063, 16
    %v2065 = vadd.s32 %v2064, %v2062
    %vm2066 = vcmp.eq.s32.totalorder %v2019, %v2065
    %v2067 = vsel %vm2066, 1, 0
    %v2068 = vcvt.s32.f32 %v2067
    %v2069 = vmul.f32 %v2034, %v2068
    %v2070 = vsel %vm2022, %v2069, 0.0
    %2071 = vadd.xlane.f32.xlu0 %v2070
    %v2072 = vpop.xlane.xlu0 %2071
    %vm2073 = vcmp.eq.s32.totalorder %v2019, 6
    %v2074 = vsel %vm2073, %v2015, 0.0
    %vm2075 = vcmp.eq.s32.totalorder %v2019, 0
    %v2076 = vcvt.s32.f32 %v2065
    %v2077 = vsel %vm2075, %v2076, 0.0
    %v2078 = vadd.f32 %v2074, %v2077
    %vm2079 = vcmp.eq.s32.totalorder %v2019, 1
    %v2080 = vsel %vm2079, %v2072, 0.0
    %v2081 = vadd.f32 %v2078, %v2080
    %vm2082 = vcmp.eq.s32.totalorder %v2019, 2
    %v2083 = vsel %vm2082, %v2043, 0.0
    %v2084 = vadd.f32 %v2081, %v2083
    %2085 = vst [vmem:[%s10] sm:$0x3] %v2084
    // Predicated region
    $region46: #{gru_policy_rollout.1} parent=1 // pred_check
      _
    $region47: #{gru_policy_rollout.1} parent=1 // pred_check_branch
      %2087 = sbr.rel (0) target = $region49
    $region48: #{gru_policy_rollout.1} parent=1 // pred_region
      %2089 = vsyncadd [#allocation5], 0
      %s2091 = sshll.u32 [#allocation6], 4
      %s2092 = int_to_ptr.vmem [resolvable:$true] %s2091
      %s2093 = sshll.u32 %s9, 4
      %s2094 = int_to_ptr.hbm [resolvable:$true] %s2093
      %2096 = dma.vmem_to_hbm [thread:$0]  %s2092, 32, %s2094, [#allocation5]
    $region49: #{gru_policy_rollout.1} parent=1 // pred_fallthru
      _
    // Predicated region
    $region50: #{gru_policy_rollout.1} parent=1 // pred_check
      _
    $region51: #{gru_policy_rollout.1} parent=1 // pred_check_branch
      %2098 = sbr.rel (0) target = $region53
    $region52: #{gru_policy_rollout.1} parent=1 // pred_region
      _
    $region53: #{gru_policy_rollout.1} parent=1 // pred_fallthru
      _
    // Predicated region
    $region54: #{gru_policy_rollout.1} parent=1 // pred_check
      _
    $region55: #{gru_policy_rollout.1} parent=1 // pred_check_branch
      %2100 = sbr.rel (0) target = $region57
    $region56: #{gru_policy_rollout.1} parent=1 // pred_region
      %2102 = vsyncadd [#allocation8], 0
      %s2104 = sshll.u32 [#allocation7], 4
      %s2105 = int_to_ptr.vmem [resolvable:$true] %s2104
      %s2106 = sshll.u32 %s11, 4
      %s2107 = int_to_ptr.hbm [resolvable:$true] %s2106
      %2109 = dma.vmem_to_hbm [thread:$0]  %s2105, 32, %s2107, [#allocation8]
    $region57: #{gru_policy_rollout.1} parent=1 // pred_fallthru
      _
    // Predicated region
    $region58: #{gru_policy_rollout.1} parent=1 // pred_check
      _
    $region59: #{gru_policy_rollout.1} parent=1 // pred_check_branch
      %2111 = sbr.rel (0) target = $region61
    $region60: #{gru_policy_rollout.1} parent=1 // pred_region
      %2113 = dma.done [#allocation5], 32
    $region61: #{gru_policy_rollout.1} parent=1 // pred_fallthru
      _
    // Predicated region
    $region62: #{gru_policy_rollout.1} parent=1 // pred_check
      _
    $region63: #{gru_policy_rollout.1} parent=1 // pred_check_branch
      %2115 = sbr.rel (0) target = $region65
    $region64: #{gru_policy_rollout.1} parent=1 // pred_region
      _
    $region65: #{gru_policy_rollout.1} parent=1 // pred_fallthru
      _
    // Predicated region
    $region66: #{gru_policy_rollout.1} parent=1 // pred_check
      _
    $region67: #{gru_policy_rollout.1} parent=1 // pred_check_branch
      %2117 = sbr.rel (0) target = $region69
    $region68: #{gru_policy_rollout.1} parent=1 // pred_region
      %2119 = dma.done [#allocation8], 32
    $region69: #{gru_policy_rollout.1} parent=1 // pred_fallthru
      _
    %2120 = vsyncpa [#allocation4], 1
    %2121 = vsyncpa [#allocation5], 1
    %2122 = vsyncpa [#allocation8], 1

</llo_original>
